<compile_context>
chip_gen: v7x
topology: tpu7x:2x2x1
jax: 0.10.0
libtpu: 0.0.40
codegen_flags: <defaults>
</compile_context>

<pallas_src>
import jax
import jax.numpy as jnp
from jax.experimental import pallas as pl
from jax.experimental.pallas import tpu as pltpu

# ----------------- configuration (small shapes implied by the forward) -------
B = 1            # forced to 1 by the module's hidden.repeat before the LSTM
E = 32           # encoder_hidden_size
D = 32           # decoder_hidden_size (== E so the attn input dim is 4*E)
T = 4            # input_encoded sequence length
T_IN = 8         # input_data sequence length (LSTM time steps)
F_IN = 16        # input_data feature dim
OUT_FEATS = 1

CTX_COLS = T * 2 * E                 # 256  (one context row / the bmm RHS length)
CTX_FLAT = T * CTX_COLS              # 1024 (flattened context)
FC_IN = CTX_FLAT + F_IN              # 1040 (fc in_features = 2E + time_length)
FCF_IN = D + 2 * E                   # 96   (fc_final in_features)
FCF_ROWS = (D + CTX_FLAT) // FCF_IN  # 11   (rows after the module's final .view)
assert (D + CTX_FLAT) % FCF_IN == 0

OUT_PAD = 32                         # per-timestep block width inside wcat
assert T * OUT_PAD == 128

# ---- constant slab row layout (lane width 128) -------------------------------
R_WCAT = 0                      # (256,128) fc_final ctx weight; block t at lanes [32t, 32t+11)
R_AW1 = R_WCAT + CTX_COLS       # 256: (64,128) attn first-layer weight (encoder half), N padded
R_WHH = R_AW1 + 2 * E           # 320: (32,128) LSTM W_hh^T, g-gate cols x2
R_WCTX = R_WHH + D              # 352: (8,128) fc ctx weight: rows 0..3 = lanes 0:128, 4..7 = 128:256
R_AB1 = R_WCTX + 2 * T          # 360: attn bias 1 (lanes 0:32)
R_AW2 = R_AB1 + 1               # 361: attn second-layer weight (lanes 0:32)
R_WIH = R_AW2 + 1               # 362: LSTM W_ih (4D), g lanes x2
R_LB = R_WIH + 1                # 363: LSTM b_ih+b_hh, g lanes x2
R_FCW = R_LB + 1                # 364: fc weight, input_data part (lanes 0:16)
R_W96H = R_FCW + 1              # 365: fc_final weight, hidden part (lanes 0:32)
R_E0 = R_W96H + 1               # 366: one-hot 1.0 at lane 0
R_SCAL = R_E0 + 1               # 367: lane0=attn_b2, lane1=fc_b, lane2=fcf_b
CONST_ROWS = R_SCAL + 1         # 368

# ---- per-call data slab row layout (lane width 256) --------------------------
DR_ENC = 0                      # rows 0:4  -> input_encoded[0] (4,64) at lanes 0:64
DR_ENCF = T                     # row 4     -> flattened input_encoded (1,256)
DR_INP = T + 1                  # rows 5:13 -> input_data[0] (8,16) at lanes 0:16
DATA_ROWS = DR_INP + T_IN       # 13


# ----------------------------- fused Pallas kernel ----------------------------
def decoder_fused_kernel(data_ref, const_ref, ctx_ref, out_ref):
    f32 = jnp.float32

    # ---- constants (single packed slab, row-range loads) ----
    wcat = const_ref[R_WCAT:R_WCAT + CTX_COLS, :]          # (256,128)
    aw1 = const_ref[R_AW1:R_AW1 + 2 * E, :]                # (64,128)
    whhT = const_ref[R_WHH:R_WHH + D, :]                   # (32,128)  g cols pre-scaled x2
    wctx_lo = const_ref[R_WCTX:R_WCTX + T, :]              # (4,128)
    wctx_hi = const_ref[R_WCTX + T:R_WCTX + 2 * T, :]      # (4,128)
    ab1 = const_ref[R_AB1:R_AB1 + 1, :]                    # (1,128)
    aw2 = const_ref[R_AW2:R_AW2 + 1, :]                    # (1,128)
    wih = const_ref[R_WIH:R_WIH + 1, :]                    # (1,128)   g lanes pre-scaled x2
    lb = const_ref[R_LB:R_LB + 1, :]                       # (1,128)   g lanes pre-scaled x2
    fcw = const_ref[R_FCW:R_FCW + 1, :]                    # (1,128)
    w96h = const_ref[R_W96H:R_W96H + 1, :]                 # (1,128)
    e0 = const_ref[R_E0:R_E0 + 1, :]                       # (1,128)
    scal = const_ref[R_SCAL:R_SCAL + 1, :]                 # (1,128)
    ab2, fcb, fcfb = scal[:, 0:1], scal[:, 1:2], scal[:, 2:3]

    # ---- per-call data (single packed slab) ----
    enc4 = data_ref[DR_ENC:DR_ENC + T, :][:, 0:2 * E]      # (4,64)
    enc_flat = data_ref[DR_ENCF:DR_ENCF + 1, :]            # (1,256)
    inp = data_ref[DR_INP:DR_INP + T_IN, :][:, 0:128]      # (8,128), lanes>=16 are zero

    # ---- temporal attention: Linear(4E,D)->tanh->Linear(D,1); h0=c0=0 so only
    #      the encoder half of the first weight contributes.  All padded lanes
    #      are zero, so every op runs on full unmasked vregs.
    h1 = jnp.tanh(jnp.dot(enc4, aw1, preferred_element_type=f32) + ab1)   # (4,128)
    scores = jnp.sum(h1 * aw2, axis=1, keepdims=True) + ab2               # (4,1)
    m = jnp.max(scores, axis=0, keepdims=True)
    ex = jnp.exp(scores - m)
    attn = ex / jnp.sum(ex, axis=0, keepdims=True)                        # softmax over T

    # ---- context = bmm(attn.unsqueeze(2), enc.view(1,1,-1)) = outer product --
    ctx = attn * enc_flat                                                 # (4,256)
    ctx_ref[...] = ctx                                                    # lane-dense output

    # ---- fc_final context part: ONE MXU chain, then block-diagonal pick ------
    p4 = jnp.dot(ctx, wcat, preferred_element_type=f32)                   # (4,128)

    def blk(t):
        row = p4[t:t + 1, :]
        return row[:, OUT_PAD * t:OUT_PAD * (t + 1)]
    acc = blk(0) + blk(1) + blk(2) + blk(3)                               # (1,32)

    # ---- fc -> y_tilde (context part identical for every LSTM step); exact VPU
    s = (jnp.sum(ctx[:, 0:128] * wctx_lo, axis=1, keepdims=True)
         + jnp.sum(ctx[:, 128:256] * wctx_hi, axis=1, keepdims=True))     # (4,1)
    ctx_dot = jnp.sum(s, axis=0, keepdims=True)                           # (1,1)
    y_tilde = jnp.sum(inp * fcw, axis=1, keepdims=True) + ctx_dot + fcb   # (8,1)

    # ---- LSTM (input=1, batch=1, zero init); 2 EUP passes per step -----------
    gates_x = y_tilde * wih + lb                                          # (8,128)
    h = jnp.zeros((1, D), f32)
    c = jnp.zeros((1, D), f32)
    for t in range(T_IN):                                                 # static unroll
        gates = gates_x[t:t + 1, :] + jnp.dot(h, whhT,
                                              preferred_element_type=f32)  # (1,128)
        sg = jax.nn.sigmoid(gates)            # one EUP pass on the full 128-lane vreg
        g = 2.0 * sg[:, 2 * D:3 * D] - 1.0    # tanh(z) = 2*sigmoid(2z)-1 (2x folded at pack)
        c = sg[:, D:2 * D] * c + sg[:, 0:D] * g                           # f*c + i*g
        h = sg[:, 3 * D:4 * D] * jnp.tanh(c)                              # o*tanh(c)

    # ---- fc_final epilogue: single unmasked (1,32) store ----------------------
    hdot = jnp.sum(h * w96h[:, 0:D], axis=1, keepdims=True)               # scalar -> out[0]
    out_ref[...] = acc + fcfb + hdot * e0[:, 0:OUT_PAD]                   # lanes 11..31 unused


# ------------------------------- parameters -----------------------------------
def init_params(key):
    ks = jax.random.split(key, 12)
    s = 0.1
    p = {}
    p["attn_w1"] = jax.random.normal(ks[0], (4 * E, D), jnp.float32) * s   # (in, out)
    p["attn_b1"] = jax.random.normal(ks[1], (1, D), jnp.float32) * s
    p["attn_w2"] = jax.random.normal(ks[2], (D, 1), jnp.float32) * s
    p["attn_b2"] = jax.random.normal(ks[3], (1, 1), jnp.float32) * s
    p["fc_w"] = jax.random.normal(ks[4], (OUT_FEATS, FC_IN), jnp.float32)  # torch (out,in); .normal_()
    p["fc_b"] = jax.random.normal(ks[5], (1, 1), jnp.float32) * s
    p["lstm_w_ih"] = jax.random.normal(ks[6], (4 * D, OUT_FEATS), jnp.float32) * s
    p["lstm_w_hh"] = jax.random.normal(ks[7], (4 * D, D), jnp.float32) * s
    p["lstm_b_ih"] = jax.random.normal(ks[8], (4 * D,), jnp.float32) * s
    p["lstm_b_hh"] = jax.random.normal(ks[9], (4 * D,), jnp.float32) * s
    p["fcf_w"] = jax.random.normal(ks[10], (FCF_IN, OUT_FEATS), jnp.float32) * s  # (in, out)
    p["fcf_b"] = jax.random.normal(ks[11], (1, 1), jnp.float32) * s
    return p


def pack_params(p):
    """Rearrange all module parameters into ONE lane-dense (368,128) slab.
    Runs once, offline."""
    f32 = jnp.float32
    w_vec = p["fcf_w"].reshape(-1)                                   # (96,)

    # fc_final weight expanded over the (11, 96)-row view of [h | ctx_flat]:
    # wexp[96*r + j, r] = w[j]; rows >= D act on ctx_flat, rows < D on hidden.
    wexp = (jnp.eye(FCF_ROWS, dtype=f32)[:, None, :] * w_vec[None, :, None]
            ).reshape(FCF_ROWS * FCF_IN, FCF_ROWS)                   # (1056, 11)
    wcf3 = wexp[D:, :].reshape(T, CTX_COLS, FCF_ROWS)                # (4,256,11)  [t,c,r]
    wcat = jnp.pad(wcf3, ((0, 0), (0, 0), (0, OUT_PAD - FCF_ROWS)))  # (4,256,32)
    wcat = jnp.transpose(wcat, (1, 0, 2)).reshape(CTX_COLS, T * OUT_PAD)  # (256,128)

    wctx = p["fc_w"][0, :CTX_FLAT].reshape(T, CTX_COLS)              # (4,256) fc ctx part

    aw1 = jnp.zeros((2 * E, 128), f32).at[:, 0:D].set(p["attn_w1"][2 * D:, :])

    # LSTM weights with the g-gate 2x fold (tanh(z) = 2*sigmoid(2z)-1)
    whhT = p["lstm_w_hh"].T                                          # (32,128)
    whhT = whhT.at[:, 2 * D:3 * D].multiply(2.0)
    wih = p["lstm_w_ih"].reshape(-1).at[2 * D:3 * D].multiply(2.0)   # (128,)
    lb = (p["lstm_b_ih"] + p["lstm_b_hh"]).at[2 * D:3 * D].multiply(2.0)

    const = jnp.zeros((CONST_ROWS, 128), f32)
    const = const.at[R_WCAT:R_WCAT + CTX_COLS, :].set(wcat)
    const = const.at[R_AW1:R_AW1 + 2 * E, :].set(aw1)
    const = const.at[R_WHH:R_WHH + D, :].set(whhT)
    const = const.at[R_WCTX:R_WCTX + T, :].set(wctx[:, 0:128])
    const = const.at[R_WCTX + T:R_WCTX + 2 * T, :].set(wctx[:, 128:256])
    const = const.at[R_AB1, 0:D].set(p["attn_b1"].reshape(-1))
    const = const.at[R_AW2, 0:D].set(p["attn_w2"].reshape(-1))
    const = const.at[R_WIH, :].set(wih)
    const = const.at[R_LB, :].set(lb)
    const = const.at[R_FCW, 0:F_IN].set(p["fc_w"][0, CTX_FLAT:])
    const = const.at[R_W96H, 0:D].set(w_vec[:D])
    const = const.at[R_E0, 0].set(1.0)
    const = const.at[R_SCAL, 0].set(p["attn_b2"][0, 0])
    const = const.at[R_SCAL, 1].set(p["fc_b"][0, 0])
    const = const.at[R_SCAL, 2].set(p["fcf_b"][0, 0])
    return const


# ------------------------------- forward --------------------------------------
def decoder_forward(const, input_encoded, input_data):
    # input_encoded: (B, T, 2E), input_data: (B, T_IN, F_IN), B == 1
    enc = input_encoded[0]                                     # (4, 64)
    inp = input_data[0]                                        # (8, 16)

    # one small per-call data slab (layout plumbing, fused by XLA)
    data = jnp.zeros((DATA_ROWS, CTX_COLS), jnp.float32)
    data = data.at[DR_ENC:DR_ENC + T, 0:2 * E].set(enc)
    data = data.at[DR_ENCF, :].set(enc.reshape(-1))
    data = data.at[DR_INP:DR_INP + T_IN, 0:F_IN].set(inp)

    vmem = pl.BlockSpec(memory_space=pltpu.MemorySpace.VMEM)
    ctx, out32 = pl.pallas_call(
        decoder_fused_kernel,
        out_shape=(jax.ShapeDtypeStruct((T, CTX_COLS), jnp.float32),
                   jax.ShapeDtypeStruct((1, OUT_PAD), jnp.float32)),
        in_specs=[vmem, vmem],
        out_specs=(vmem, vmem),
    )(data, const)

    # lanes FCF_ROWS..31 of out32 are padding (bias only) and must not be read.
    out = out32[0:1, 0:FCF_ROWS].reshape(FCF_ROWS, OUT_FEATS)  # (11, 1), as torch returns
    context = ctx.reshape(B, T, CTX_COLS)                      # (1, T, T*2E)
    return out, context


# ------------------------- pure-JAX reference (checks) -------------------------
def decoder_reference(p, input_encoded, input_data):
    """Direct transcription of Decoder.forward (eval mode, zero h0/c0)."""
    with jax.default_matmul_precision("highest"):
        b = input_encoded.shape[0]
        hidden = jnp.zeros((1, b, D), jnp.float32)
        cell = jnp.zeros((1, b, D), jnp.float32)
        h_rep = jnp.broadcast_to(hidden, (T, b, D)).transpose(1, 0, 2)
        c_rep = jnp.broadcast_to(cell, (T, b, D)).transpose(1, 0, 2)
        x = jnp.concatenate([h_rep, c_rep, input_encoded], axis=2)       # (b, T, 4E)
        z = jnp.tanh(x.reshape(-1, 4 * E) @ p["attn_w1"] + p["attn_b1"])
        s = (z @ p["attn_w2"] + p["attn_b2"]).reshape(b, -1)             # (b, T)
        attn = jax.nn.softmax(s, axis=1)
        context = attn[:, :, None] @ input_encoded.reshape(b, 1, -1)     # (b, T, T*2E)
        ctx_rep = jnp.broadcast_to(context.reshape(b, 1, -1),
                                   (b, input_data.shape[1], CTX_FLAT))
        feats = jnp.concatenate([ctx_rep, input_data], axis=2)           # (b, T_IN, FC_IN)
        y = jnp.einsum("btf,f->bt", feats, p["fc_w"][0]) + p["fc_b"][0, 0]
        w_ih, w_hh = p["lstm_w_ih"], p["lstm_w_hh"]
        bias = p["lstm_b_ih"] + p["lstm_b_hh"]
        h = jnp.zeros((b, D), jnp.float32)
        c = jnp.zeros((b, D), jnp.float32)
        for t in range(T_IN):
            gates = y[:, t:t + 1] @ w_ih.T + h @ w_hh.T + bias
            i = jax.nn.sigmoid(gates[:, :D])
            f = jax.nn.sigmoid(gates[:, D:2 * D])
            g = jnp.tanh(gates[:, 2 * D:3 * D])
            o = jax.nn.sigmoid(gates[:, 3 * D:4 * D])
            c = f * c + i * g
            h = o * jnp.tanh(c)
        cat = jnp.concatenate([h[None], context.reshape(1, b, -1)], axis=2)
        out = cat.reshape(-1, FCF_IN) @ p["fcf_w"] + p["fcf_b"][0]       # (11, 1)
        return out, context


if __name__ == "__main__":
    key = jax.random.PRNGKey(0)
    kp, ke, kd = jax.random.split(key, 3)
    params = init_params(kp)
    const = pack_params(params)
    input_encoded = jax.random.normal(ke, (B, T, 2 * E), jnp.float32)
    input_data = jax.random.normal(kd, (B, T_IN, F_IN), jnp.float32)

    out, context = jax.jit(decoder_forward)(const, input_encoded, input_data)
    jax.block_until_ready((out, context))

    assert out.shape == (FCF_ROWS, OUT_FEATS), out.shape
    assert context.shape == (B, T, CTX_COLS), context.shape

    ref_out, ref_ctx = decoder_reference(params, input_encoded, input_data)
    assert bool(jnp.allclose(out, ref_out, rtol=2e-3, atol=2e-3)), "fc_final mismatch"
    assert bool(jnp.allclose(context, ref_ctx, rtol=2e-3, atol=2e-3)), "context mismatch"
    print("KERNEL_OK")
</pallas_src>

<mosaic_0001>
module attributes {stable_mosaic.version = 11 : i64} {
  func.func @decoder_fused_kernel(%arg0: memref<13x256xf32, #tpu.memory_space<vmem>>, %arg1: memref<368x128xf32, #tpu.memory_space<vmem>>, %arg2: memref<4x256xf32, #tpu.memory_space<vmem>>, %arg3: memref<1x32xf32, #tpu.memory_space<vmem>>) attributes {dimension_semantics = [], scalar_prefetch = 0 : i64, scratch_operands = 0 : i64, tpu.core_type = #tpu.core_type<tc>} {
    %c0 = arith.constant 0 : index
    %c0_0 = arith.constant 0 : index
    %0 = vector.load %arg1[%c0, %c0_0] : memref<368x128xf32, #tpu.memory_space<vmem>>, vector<256x128xf32>
    %c256 = arith.constant 256 : index
    %c0_1 = arith.constant 0 : index
    %1 = vector.load %arg1[%c256, %c0_1] : memref<368x128xf32, #tpu.memory_space<vmem>>, vector<64x128xf32>
    %c320 = arith.constant 320 : index
    %c0_2 = arith.constant 0 : index
    %2 = vector.load %arg1[%c320, %c0_2] : memref<368x128xf32, #tpu.memory_space<vmem>>, vector<32x128xf32>
    %c352 = arith.constant 352 : index
    %c0_3 = arith.constant 0 : index
    %3 = vector.load %arg1[%c352, %c0_3] : memref<368x128xf32, #tpu.memory_space<vmem>>, vector<4x128xf32>
    %c356 = arith.constant 356 : index
    %c0_4 = arith.constant 0 : index
    %4 = vector.load %arg1[%c356, %c0_4] : memref<368x128xf32, #tpu.memory_space<vmem>>, vector<4x128xf32>
    %c360 = arith.constant 360 : index
    %c0_5 = arith.constant 0 : index
    %5 = vector.load %arg1[%c360, %c0_5] : memref<368x128xf32, #tpu.memory_space<vmem>>, vector<1x128xf32>
    %c361 = arith.constant 361 : index
    %c0_6 = arith.constant 0 : index
    %6 = vector.load %arg1[%c361, %c0_6] : memref<368x128xf32, #tpu.memory_space<vmem>>, vector<1x128xf32>
    %c362 = arith.constant 362 : index
    %c0_7 = arith.constant 0 : index
    %7 = vector.load %arg1[%c362, %c0_7] : memref<368x128xf32, #tpu.memory_space<vmem>>, vector<1x128xf32>
    %c363 = arith.constant 363 : index
    %c0_8 = arith.constant 0 : index
    %8 = vector.load %arg1[%c363, %c0_8] : memref<368x128xf32, #tpu.memory_space<vmem>>, vector<1x128xf32>
    %c364 = arith.constant 364 : index
    %c0_9 = arith.constant 0 : index
    %9 = vector.load %arg1[%c364, %c0_9] : memref<368x128xf32, #tpu.memory_space<vmem>>, vector<1x128xf32>
    %c365 = arith.constant 365 : index
    %c0_10 = arith.constant 0 : index
    %10 = vector.load %arg1[%c365, %c0_10] : memref<368x128xf32, #tpu.memory_space<vmem>>, vector<1x128xf32>
    %c366 = arith.constant 366 : index
    %c0_11 = arith.constant 0 : index
    %11 = vector.load %arg1[%c366, %c0_11] : memref<368x128xf32, #tpu.memory_space<vmem>>, vector<1x128xf32>
    %c367 = arith.constant 367 : index
    %c0_12 = arith.constant 0 : index
    %12 = vector.load %arg1[%c367, %c0_12] : memref<368x128xf32, #tpu.memory_space<vmem>>, vector<1x128xf32>
    %13 = vector.extract_strided_slice %12 {offsets = [0, 0], sizes = [1, 1], strides = [1, 1]} : vector<1x128xf32> to vector<1x1xf32>
    %14 = vector.extract_strided_slice %12 {offsets = [0, 1], sizes = [1, 1], strides = [1, 1]} : vector<1x128xf32> to vector<1x1xf32>
    %15 = vector.extract_strided_slice %12 {offsets = [0, 2], sizes = [1, 1], strides = [1, 1]} : vector<1x128xf32> to vector<1x1xf32>
    %c0_13 = arith.constant 0 : index
    %c0_14 = arith.constant 0 : index
    %16 = vector.load %arg0[%c0_13, %c0_14] : memref<13x256xf32, #tpu.memory_space<vmem>>, vector<4x256xf32>
    %17 = vector.extract_strided_slice %16 {offsets = [0, 0], sizes = [4, 64], strides = [1, 1]} : vector<4x256xf32> to vector<4x64xf32>
    %c4 = arith.constant 4 : index
    %c0_15 = arith.constant 0 : index
    %18 = vector.load %arg0[%c4, %c0_15] : memref<13x256xf32, #tpu.memory_space<vmem>>, vector<1x256xf32>
    %c5 = arith.constant 5 : index
    %c0_16 = arith.constant 0 : index
    %19 = vector.load %arg0[%c5, %c0_16] : memref<13x256xf32, #tpu.memory_space<vmem>>, vector<8x256xf32>
    %20 = vector.extract_strided_slice %19 {offsets = [0, 0], sizes = [8, 128], strides = [1, 1]} : vector<8x256xf32> to vector<8x128xf32>
    %cst = arith.constant dense<0.000000e+00> : vector<4x128xf32>
    %21 = tpu.matmul %17, %1, %cst {dimension_numbers = #tpu.dot_dimension_numbers<[1], [0], [0], [1], [0, 0, 1, 1], [], []>} : vector<4x64xf32>, vector<64x128xf32>, vector<4x128xf32> -> vector<4x128xf32>
    %22 = vector.broadcast %5 : vector<1x128xf32> to vector<4x128xf32>
    %23 = arith.addf %21, %22 : vector<4x128xf32>
    %24 = math.tanh %23 : vector<4x128xf32>
    %25 = vector.broadcast %6 : vector<1x128xf32> to vector<4x128xf32>
    %26 = arith.mulf %24, %25 : vector<4x128xf32>
    %cst_17 = arith.constant dense<0.000000e+00> : vector<4xf32>
    %27 = vector.multi_reduction <add>, %26, %cst_17 [1] : vector<4x128xf32> to vector<4xf32>
    %28 = vector.shape_cast %27 : vector<4xf32> to vector<4x1xf32>
    %29 = vector.broadcast %13 : vector<1x1xf32> to vector<4x1xf32>
    %30 = arith.addf %28, %29 : vector<4x1xf32>
    %cst_18 = arith.constant dense<0xFF800000> : vector<1xf32>
    %31 = vector.multi_reduction <maximumf>, %30, %cst_18 [0] : vector<4x1xf32> to vector<1xf32>
    %32 = vector.shape_cast %31 : vector<1xf32> to vector<1x1xf32>
    %33 = vector.broadcast %32 : vector<1x1xf32> to vector<4x1xf32>
    %34 = arith.subf %30, %33 : vector<4x1xf32>
    %35 = math.exp %34 : vector<4x1xf32>
    %cst_19 = arith.constant dense<0.000000e+00> : vector<1xf32>
    %36 = vector.multi_reduction <add>, %35, %cst_19 [0] : vector<4x1xf32> to vector<1xf32>
    %37 = vector.shape_cast %36 : vector<1xf32> to vector<1x1xf32>
    %38 = vector.broadcast %37 : vector<1x1xf32> to vector<4x1xf32>
    %39 = arith.divf %35, %38 : vector<4x1xf32>
    %40 = vector.broadcast %39 : vector<4x1xf32> to vector<4x256xf32>
    %41 = vector.broadcast %18 : vector<1x256xf32> to vector<4x256xf32>
    %42 = arith.mulf %40, %41 : vector<4x256xf32>
    %c0_20 = arith.constant 0 : index
    %c0_21 = arith.constant 0 : index
    %43 = vector.load %arg2[%c0_20, %c0_21] : memref<4x256xf32, #tpu.memory_space<vmem>>, vector<4x256xf32>
    tpu.vector_store %arg2[%c0_20, %c0_21], %42 {strides = array<i32>} : memref<4x256xf32, #tpu.memory_space<vmem>>, vector<4x256xf32>,
    %cst_22 = arith.constant dense<0.000000e+00> : vector<4x128xf32>
    %44 = tpu.matmul %42, %0, %cst_22 {dimension_numbers = #tpu.dot_dimension_numbers<[1], [0], [0], [1], [0, 0, 1, 1], [], []>} : vector<4x256xf32>, vector<256x128xf32>, vector<4x128xf32> -> vector<4x128xf32>
    %45 = vector.extract_strided_slice %44 {offsets = [0, 0], sizes = [1, 128], strides = [1, 1]} : vector<4x128xf32> to vector<1x128xf32>
    %46 = vector.extract_strided_slice %45 {offsets = [0, 0], sizes = [1, 32], strides = [1, 1]} : vector<1x128xf32> to vector<1x32xf32>
    %47 = vector.extract_strided_slice %44 {offsets = [1, 0], sizes = [1, 128], strides = [1, 1]} : vector<4x128xf32> to vector<1x128xf32>
    %48 = vector.extract_strided_slice %47 {offsets = [0, 32], sizes = [1, 32], strides = [1, 1]} : vector<1x128xf32> to vector<1x32xf32>
    %49 = arith.addf %46, %48 : vector<1x32xf32>
    %50 = vector.extract_strided_slice %44 {offsets = [2, 0], sizes = [1, 128], strides = [1, 1]} : vector<4x128xf32> to vector<1x128xf32>
    %51 = vector.extract_strided_slice %50 {offsets = [0, 64], sizes = [1, 32], strides = [1, 1]} : vector<1x128xf32> to vector<1x32xf32>
    %52 = arith.addf %49, %51 : vector<1x32xf32>
    %53 = vector.extract_strided_slice %44 {offsets = [3, 0], sizes = [1, 128], strides = [1, 1]} : vector<4x128xf32> to vector<1x128xf32>
    %54 = vector.extract_strided_slice %53 {offsets = [0, 96], sizes = [1, 32], strides = [1, 1]} : vector<1x128xf32> to vector<1x32xf32>
    %55 = arith.addf %52, %54 : vector<1x32xf32>
    %56 = vector.extract_strided_slice %42 {offsets = [0, 0], sizes = [4, 128], strides = [1, 1]} : vector<4x256xf32> to vector<4x128xf32>
    %57 = arith.mulf %56, %3 : vector<4x128xf32>
    %cst_23 = arith.constant dense<0.000000e+00> : vector<4xf32>
    %58 = vector.multi_reduction <add>, %57, %cst_23 [1] : vector<4x128xf32> to vector<4xf32>
    %59 = vector.shape_cast %58 : vector<4xf32> to vector<4x1xf32>
    %60 = vector.extract_strided_slice %42 {offsets = [0, 128], sizes = [4, 128], strides = [1, 1]} : vector<4x256xf32> to vector<4x128xf32>
    %61 = arith.mulf %60, %4 : vector<4x128xf32>
    %cst_24 = arith.constant dense<0.000000e+00> : vector<4xf32>
    %62 = vector.multi_reduction <add>, %61, %cst_24 [1] : vector<4x128xf32> to vector<4xf32>
    %63 = vector.shape_cast %62 : vector<4xf32> to vector<4x1xf32>
    %64 = arith.addf %59, %63 : vector<4x1xf32>
    %cst_25 = arith.constant dense<0.000000e+00> : vector<1xf32>
    %65 = vector.multi_reduction <add>, %64, %cst_25 [0] : vector<4x1xf32> to vector<1xf32>
    %66 = vector.shape_cast %65 : vector<1xf32> to vector<1x1xf32>
    %67 = vector.broadcast %9 : vector<1x128xf32> to vector<8x128xf32>
    %68 = arith.mulf %20, %67 : vector<8x128xf32>
    %cst_26 = arith.constant dense<0.000000e+00> : vector<8xf32>
    %69 = vector.multi_reduction <add>, %68, %cst_26 [1] : vector<8x128xf32> to vector<8xf32>
    %70 = vector.shape_cast %69 : vector<8xf32> to vector<8x1xf32>
    %71 = vector.broadcast %66 : vector<1x1xf32> to vector<8x1xf32>
    %72 = arith.addf %70, %71 : vector<8x1xf32>
    %73 = vector.broadcast %14 : vector<1x1xf32> to vector<8x1xf32>
    %74 = arith.addf %72, %73 : vector<8x1xf32>
    %75 = vector.broadcast %74 : vector<8x1xf32> to vector<8x128xf32>
    %76 = vector.broadcast %7 : vector<1x128xf32> to vector<8x128xf32>
    %77 = arith.mulf %75, %76 : vector<8x128xf32>
    %78 = vector.broadcast %8 : vector<1x128xf32> to vector<8x128xf32>
    %79 = arith.addf %77, %78 : vector<8x128xf32>
    %cst_27 = arith.constant 0.000000e+00 : f32
    %80 = vector.broadcast %cst_27 : f32 to vector<1x32xf32>
    %cst_28 = arith.constant 0.000000e+00 : f32
    %81 = vector.broadcast %cst_28 : f32 to vector<1x32xf32>
    %82 = vector.extract_strided_slice %79 {offsets = [0, 0], sizes = [1, 128], strides = [1, 1]} : vector<8x128xf32> to vector<1x128xf32>
    %cst_29 = arith.constant dense<0.000000e+00> : vector<1x128xf32>
    %83 = tpu.matmul %80, %2, %cst_29 {dimension_numbers = #tpu.dot_dimension_numbers<[1], [0], [0], [1], [0, 0, 1, 1], [], []>} : vector<1x32xf32>, vector<32x128xf32>, vector<1x128xf32> -> vector<1x128xf32>
    %84 = arith.addf %82, %83 : vector<1x128xf32>
    %85 = arith.negf %84 : vector<1x128xf32>
    %86 = math.exp %85 : vector<1x128xf32>
    %cst_30 = arith.constant 1.000000e+00 : f32
    %87 = vector.broadcast %cst_30 : f32 to vector<1x128xf32>
    %88 = arith.addf %87, %86 : vector<1x128xf32>
    %89 = arith.divf %87, %88 : vector<1x128xf32>
    %90 = vector.extract_strided_slice %89 {offsets = [0, 64], sizes = [1, 32], strides = [1, 1]} : vector<1x128xf32> to vector<1x32xf32>
    %cst_31 = arith.constant 2.000000e+00 : f32
    %91 = vector.broadcast %cst_31 : f32 to vector<1x32xf32>
    %92 = arith.mulf %91, %90 : vector<1x32xf32>
    %cst_32 = arith.constant 1.000000e+00 : f32
    %93 = vector.broadcast %cst_32 : f32 to vector<1x32xf32>
    %94 = arith.subf %92, %93 : vector<1x32xf32>
    %95 = vector.extract_strided_slice %89 {offsets = [0, 32], sizes = [1, 32], strides = [1, 1]} : vector<1x128xf32> to vector<1x32xf32>
    %96 = arith.mulf %95, %81 : vector<1x32xf32>
    %97 = vector.extract_strided_slice %89 {offsets = [0, 0], sizes = [1, 32], strides = [1, 1]} : vector<1x128xf32> to vector<1x32xf32>
    %98 = arith.mulf %97, %94 : vector<1x32xf32>
    %99 = arith.addf %96, %98 : vector<1x32xf32>
    %100 = vector.extract_strided_slice %89 {offsets = [0, 96], sizes = [1, 32], strides = [1, 1]} : vector<1x128xf32> to vector<1x32xf32>
    %101 = math.tanh %99 : vector<1x32xf32>
    %102 = arith.mulf %100, %101 : vector<1x32xf32>
    %103 = vector.extract_strided_slice %79 {offsets = [1, 0], sizes = [1, 128], strides = [1, 1]} : vector<8x128xf32> to vector<1x128xf32>
    %cst_33 = arith.constant dense<0.000000e+00> : vector<1x128xf32>
    %104 = tpu.matmul %102, %2, %cst_33 {dimension_numbers = #tpu.dot_dimension_numbers<[1], [0], [0], [1], [0, 0, 1, 1], [], []>} : vector<1x32xf32>, vector<32x128xf32>, vector<1x128xf32> -> vector<1x128xf32>
    %105 = arith.addf %103, %104 : vector<1x128xf32>
    %106 = arith.negf %105 : vector<1x128xf32>
    %107 = math.exp %106 : vector<1x128xf32>
    %cst_34 = arith.constant 1.000000e+00 : f32
    %108 = vector.broadcast %cst_34 : f32 to vector<1x128xf32>
    %109 = arith.addf %108, %107 : vector<1x128xf32>
    %110 = arith.divf %108, %109 : vector<1x128xf32>
    %111 = vector.extract_strided_slice %110 {offsets = [0, 64], sizes = [1, 32], strides = [1, 1]} : vector<1x128xf32> to vector<1x32xf32>
    %cst_35 = arith.constant 2.000000e+00 : f32
    %112 = vector.broadcast %cst_35 : f32 to vector<1x32xf32>
    %113 = arith.mulf %112, %111 : vector<1x32xf32>
    %cst_36 = arith.constant 1.000000e+00 : f32
    %114 = vector.broadcast %cst_36 : f32 to vector<1x32xf32>
    %115 = arith.subf %113, %114 : vector<1x32xf32>
    %116 = vector.extract_strided_slice %110 {offsets = [0, 32], sizes = [1, 32], strides = [1, 1]} : vector<1x128xf32> to vector<1x32xf32>
    %117 = arith.mulf %116, %99 : vector<1x32xf32>
    %118 = vector.extract_strided_slice %110 {offsets = [0, 0], sizes = [1, 32], strides = [1, 1]} : vector<1x128xf32> to vector<1x32xf32>
    %119 = arith.mulf %118, %115 : vector<1x32xf32>
    %120 = arith.addf %117, %119 : vector<1x32xf32>
    %121 = vector.extract_strided_slice %110 {offsets = [0, 96], sizes = [1, 32], strides = [1, 1]} : vector<1x128xf32> to vector<1x32xf32>
    %122 = math.tanh %120 : vector<1x32xf32>
    %123 = arith.mulf %121, %122 : vector<1x32xf32>
    %124 = vector.extract_strided_slice %79 {offsets = [2, 0], sizes = [1, 128], strides = [1, 1]} : vector<8x128xf32> to vector<1x128xf32>
    %cst_37 = arith.constant dense<0.000000e+00> : vector<1x128xf32>
    %125 = tpu.matmul %123, %2, %cst_37 {dimension_numbers = #tpu.dot_dimension_numbers<[1], [0], [0], [1], [0, 0, 1, 1], [], []>} : vector<1x32xf32>, vector<32x128xf32>, vector<1x128xf32> -> vector<1x128xf32>
    %126 = arith.addf %124, %125 : vector<1x128xf32>
    %127 = arith.negf %126 : vector<1x128xf32>
    %128 = math.exp %127 : vector<1x128xf32>
    %cst_38 = arith.constant 1.000000e+00 : f32
    %129 = vector.broadcast %cst_38 : f32 to vector<1x128xf32>
    %130 = arith.addf %129, %128 : vector<1x128xf32>
    %131 = arith.divf %129, %130 : vector<1x128xf32>
    %132 = vector.extract_strided_slice %131 {offsets = [0, 64], sizes = [1, 32], strides = [1, 1]} : vector<1x128xf32> to vector<1x32xf32>
    %cst_39 = arith.constant 2.000000e+00 : f32
    %133 = vector.broadcast %cst_39 : f32 to vector<1x32xf32>
    %134 = arith.mulf %133, %132 : vector<1x32xf32>
    %cst_40 = arith.constant 1.000000e+00 : f32
    %135 = vector.broadcast %cst_40 : f32 to vector<1x32xf32>
    %136 = arith.subf %134, %135 : vector<1x32xf32>
    %137 = vector.extract_strided_slice %131 {offsets = [0, 32], sizes = [1, 32], strides = [1, 1]} : vector<1x128xf32> to vector<1x32xf32>
    %138 = arith.mulf %137, %120 : vector<1x32xf32>
    %139 = vector.extract_strided_slice %131 {offsets = [0, 0], sizes = [1, 32], strides = [1, 1]} : vector<1x128xf32> to vector<1x32xf32>
    %140 = arith.mulf %139, %136 : vector<1x32xf32>
    %141 = arith.addf %138, %140 : vector<1x32xf32>
    %142 = vector.extract_strided_slice %131 {offsets = [0, 96], sizes = [1, 32], strides = [1, 1]} : vector<1x128xf32> to vector<1x32xf32>
    %143 = math.tanh %141 : vector<1x32xf32>
    %144 = arith.mulf %142, %143 : vector<1x32xf32>
    %145 = vector.extract_strided_slice %79 {offsets = [3, 0], sizes = [1, 128], strides = [1, 1]} : vector<8x128xf32> to vector<1x128xf32>
    %cst_41 = arith.constant dense<0.000000e+00> : vector<1x128xf32>
    %146 = tpu.matmul %144, %2, %cst_41 {dimension_numbers = #tpu.dot_dimension_numbers<[1], [0], [0], [1], [0, 0, 1, 1], [], []>} : vector<1x32xf32>, vector<32x128xf32>, vector<1x128xf32> -> vector<1x128xf32>
    %147 = arith.addf %145, %146 : vector<1x128xf32>
    %148 = arith.negf %147 : vector<1x128xf32>
    %149 = math.exp %148 : vector<1x128xf32>
    %cst_42 = arith.constant 1.000000e+00 : f32
    %150 = vector.broadcast %cst_42 : f32 to vector<1x128xf32>
    %151 = arith.addf %150, %149 : vector<1x128xf32>
    %152 = arith.divf %150, %151 : vector<1x128xf32>
    %153 = vector.extract_strided_slice %152 {offsets = [0, 64], sizes = [1, 32], strides = [1, 1]} : vector<1x128xf32> to vector<1x32xf32>
    %cst_43 = arith.constant 2.000000e+00 : f32
    %154 = vector.broadcast %cst_43 : f32 to vector<1x32xf32>
    %155 = arith.mulf %154, %153 : vector<1x32xf32>
    %cst_44 = arith.constant 1.000000e+00 : f32
    %156 = vector.broadcast %cst_44 : f32 to vector<1x32xf32>
    %157 = arith.subf %155, %156 : vector<1x32xf32>
    %158 = vector.extract_strided_slice %152 {offsets = [0, 32], sizes = [1, 32], strides = [1, 1]} : vector<1x128xf32> to vector<1x32xf32>
    %159 = arith.mulf %158, %141 : vector<1x32xf32>
    %160 = vector.extract_strided_slice %152 {offsets = [0, 0], sizes = [1, 32], strides = [1, 1]} : vector<1x128xf32> to vector<1x32xf32>
    %161 = arith.mulf %160, %157 : vector<1x32xf32>
    %162 = arith.addf %159, %161 : vector<1x32xf32>
    %163 = vector.extract_strided_slice %152 {offsets = [0, 96], sizes = [1, 32], strides = [1, 1]} : vector<1x128xf32> to vector<1x32xf32>
    %164 = math.tanh %162 : vector<1x32xf32>
    %165 = arith.mulf %163, %164 : vector<1x32xf32>
    %166 = vector.extract_strided_slice %79 {offsets = [4, 0], sizes = [1, 128], strides = [1, 1]} : vector<8x128xf32> to vector<1x128xf32>
    %cst_45 = arith.constant dense<0.000000e+00> : vector<1x128xf32>
    %167 = tpu.matmul %165, %2, %cst_45 {dimension_numbers = #tpu.dot_dimension_numbers<[1], [0], [0], [1], [0, 0, 1, 1], [], []>} : vector<1x32xf32>, vector<32x128xf32>, vector<1x128xf32> -> vector<1x128xf32>
    %168 = arith.addf %166, %167 : vector<1x128xf32>
    %169 = arith.negf %168 : vector<1x128xf32>
    %170 = math.exp %169 : vector<1x128xf32>
    %cst_46 = arith.constant 1.000000e+00 : f32
    %171 = vector.broadcast %cst_46 : f32 to vector<1x128xf32>
    %172 = arith.addf %171, %170 : vector<1x128xf32>
    %173 = arith.divf %171, %172 : vector<1x128xf32>
    %174 = vector.extract_strided_slice %173 {offsets = [0, 64], sizes = [1, 32], strides = [1, 1]} : vector<1x128xf32> to vector<1x32xf32>
    %cst_47 = arith.constant 2.000000e+00 : f32
    %175 = vector.broadcast %cst_47 : f32 to vector<1x32xf32>
    %176 = arith.mulf %175, %174 : vector<1x32xf32>
    %cst_48 = arith.constant 1.000000e+00 : f32
    %177 = vector.broadcast %cst_48 : f32 to vector<1x32xf32>
    %178 = arith.subf %176, %177 : vector<1x32xf32>
    %179 = vector.extract_strided_slice %173 {offsets = [0, 32], sizes = [1, 32], strides = [1, 1]} : vector<1x128xf32> to vector<1x32xf32>
    %180 = arith.mulf %179, %162 : vector<1x32xf32>
    %181 = vector.extract_strided_slice %173 {offsets = [0, 0], sizes = [1, 32], strides = [1, 1]} : vector<1x128xf32> to vector<1x32xf32>
    %182 = arith.mulf %181, %178 : vector<1x32xf32>
    %183 = arith.addf %180, %182 : vector<1x32xf32>
    %184 = vector.extract_strided_slice %173 {offsets = [0, 96], sizes = [1, 32], strides = [1, 1]} : vector<1x128xf32> to vector<1x32xf32>
    %185 = math.tanh %183 : vector<1x32xf32>
    %186 = arith.mulf %184, %185 : vector<1x32xf32>
    %187 = vector.extract_strided_slice %79 {offsets = [5, 0], sizes = [1, 128], strides = [1, 1]} : vector<8x128xf32> to vector<1x128xf32>
    %cst_49 = arith.constant dense<0.000000e+00> : vector<1x128xf32>
    %188 = tpu.matmul %186, %2, %cst_49 {dimension_numbers = #tpu.dot_dimension_numbers<[1], [0], [0], [1], [0, 0, 1, 1], [], []>} : vector<1x32xf32>, vector<32x128xf32>, vector<1x128xf32> -> vector<1x128xf32>
    %189 = arith.addf %187, %188 : vector<1x128xf32>
    %190 = arith.negf %189 : vector<1x128xf32>
    %191 = math.exp %190 : vector<1x128xf32>
    %cst_50 = arith.constant 1.000000e+00 : f32
    %192 = vector.broadcast %cst_50 : f32 to vector<1x128xf32>
    %193 = arith.addf %192, %191 : vector<1x128xf32>
    %194 = arith.divf %192, %193 : vector<1x128xf32>
    %195 = vector.extract_strided_slice %194 {offsets = [0, 64], sizes = [1, 32], strides = [1, 1]} : vector<1x128xf32> to vector<1x32xf32>
    %cst_51 = arith.constant 2.000000e+00 : f32
    %196 = vector.broadcast %cst_51 : f32 to vector<1x32xf32>
    %197 = arith.mulf %196, %195 : vector<1x32xf32>
    %cst_52 = arith.constant 1.000000e+00 : f32
    %198 = vector.broadcast %cst_52 : f32 to vector<1x32xf32>
    %199 = arith.subf %197, %198 : vector<1x32xf32>
    %200 = vector.extract_strided_slice %194 {offsets = [0, 32], sizes = [1, 32], strides = [1, 1]} : vector<1x128xf32> to vector<1x32xf32>
    %201 = arith.mulf %200, %183 : vector<1x32xf32>
    %202 = vector.extract_strided_slice %194 {offsets = [0, 0], sizes = [1, 32], strides = [1, 1]} : vector<1x128xf32> to vector<1x32xf32>
    %203 = arith.mulf %202, %199 : vector<1x32xf32>
    %204 = arith.addf %201, %203 : vector<1x32xf32>
    %205 = vector.extract_strided_slice %194 {offsets = [0, 96], sizes = [1, 32], strides = [1, 1]} : vector<1x128xf32> to vector<1x32xf32>
    %206 = math.tanh %204 : vector<1x32xf32>
    %207 = arith.mulf %205, %206 : vector<1x32xf32>
    %208 = vector.extract_strided_slice %79 {offsets = [6, 0], sizes = [1, 128], strides = [1, 1]} : vector<8x128xf32> to vector<1x128xf32>
    %cst_53 = arith.constant dense<0.000000e+00> : vector<1x128xf32>
    %209 = tpu.matmul %207, %2, %cst_53 {dimension_numbers = #tpu.dot_dimension_numbers<[1], [0], [0], [1], [0, 0, 1, 1], [], []>} : vector<1x32xf32>, vector<32x128xf32>, vector<1x128xf32> -> vector<1x128xf32>
    %210 = arith.addf %208, %209 : vector<1x128xf32>
    %211 = arith.negf %210 : vector<1x128xf32>
    %212 = math.exp %211 : vector<1x128xf32>
    %cst_54 = arith.constant 1.000000e+00 : f32
    %213 = vector.broadcast %cst_54 : f32 to vector<1x128xf32>
    %214 = arith.addf %213, %212 : vector<1x128xf32>
    %215 = arith.divf %213, %214 : vector<1x128xf32>
    %216 = vector.extract_strided_slice %215 {offsets = [0, 64], sizes = [1, 32], strides = [1, 1]} : vector<1x128xf32> to vector<1x32xf32>
    %cst_55 = arith.constant 2.000000e+00 : f32
    %217 = vector.broadcast %cst_55 : f32 to vector<1x32xf32>
    %218 = arith.mulf %217, %216 : vector<1x32xf32>
    %cst_56 = arith.constant 1.000000e+00 : f32
    %219 = vector.broadcast %cst_56 : f32 to vector<1x32xf32>
    %220 = arith.subf %218, %219 : vector<1x32xf32>
    %221 = vector.extract_strided_slice %215 {offsets = [0, 32], sizes = [1, 32], strides = [1, 1]} : vector<1x128xf32> to vector<1x32xf32>
    %222 = arith.mulf %221, %204 : vector<1x32xf32>
    %223 = vector.extract_strided_slice %215 {offsets = [0, 0], sizes = [1, 32], strides = [1, 1]} : vector<1x128xf32> to vector<1x32xf32>
    %224 = arith.mulf %223, %220 : vector<1x32xf32>
    %225 = arith.addf %222, %224 : vector<1x32xf32>
    %226 = vector.extract_strided_slice %215 {offsets = [0, 96], sizes = [1, 32], strides = [1, 1]} : vector<1x128xf32> to vector<1x32xf32>
    %227 = math.tanh %225 : vector<1x32xf32>
    %228 = arith.mulf %226, %227 : vector<1x32xf32>
    %229 = vector.extract_strided_slice %79 {offsets = [7, 0], sizes = [1, 128], strides = [1, 1]} : vector<8x128xf32> to vector<1x128xf32>
    %cst_57 = arith.constant dense<0.000000e+00> : vector<1x128xf32>
    %230 = tpu.matmul %228, %2, %cst_57 {dimension_numbers = #tpu.dot_dimension_numbers<[1], [0], [0], [1], [0, 0, 1, 1], [], []>} : vector<1x32xf32>, vector<32x128xf32>, vector<1x128xf32> -> vector<1x128xf32>
    %231 = arith.addf %229, %230 : vector<1x128xf32>
    %232 = arith.negf %231 : vector<1x128xf32>
    %233 = math.exp %232 : vector<1x128xf32>
    %cst_58 = arith.constant 1.000000e+00 : f32
    %234 = vector.broadcast %cst_58 : f32 to vector<1x128xf32>
    %235 = arith.addf %234, %233 : vector<1x128xf32>
    %236 = arith.divf %234, %235 : vector<1x128xf32>
    %237 = vector.extract_strided_slice %236 {offsets = [0, 64], sizes = [1, 32], strides = [1, 1]} : vector<1x128xf32> to vector<1x32xf32>
    %cst_59 = arith.constant 2.000000e+00 : f32
    %238 = vector.broadcast %cst_59 : f32 to vector<1x32xf32>
    %239 = arith.mulf %238, %237 : vector<1x32xf32>
    %cst_60 = arith.constant 1.000000e+00 : f32
    %240 = vector.broadcast %cst_60 : f32 to vector<1x32xf32>
    %241 = arith.subf %239, %240 : vector<1x32xf32>
    %242 = vector.extract_strided_slice %236 {offsets = [0, 32], sizes = [1, 32], strides = [1, 1]} : vector<1x128xf32> to vector<1x32xf32>
    %243 = arith.mulf %242, %225 : vector<1x32xf32>
    %244 = vector.extract_strided_slice %236 {offsets = [0, 0], sizes = [1, 32], strides = [1, 1]} : vector<1x128xf32> to vector<1x32xf32>
    %245 = arith.mulf %244, %241 : vector<1x32xf32>
    %246 = arith.addf %243, %245 : vector<1x32xf32>
    %247 = vector.extract_strided_slice %236 {offsets = [0, 96], sizes = [1, 32], strides = [1, 1]} : vector<1x128xf32> to vector<1x32xf32>
    %248 = math.tanh %246 : vector<1x32xf32>
    %249 = arith.mulf %247, %248 : vector<1x32xf32>
    %250 = vector.extract_strided_slice %10 {offsets = [0, 0], sizes = [1, 32], strides = [1, 1]} : vector<1x128xf32> to vector<1x32xf32>
    %251 = arith.mulf %249, %250 : vector<1x32xf32>
    %cst_61 = arith.constant dense<0.000000e+00> : vector<1xf32>
    %252 = vector.multi_reduction <add>, %251, %cst_61 [1] : vector<1x32xf32> to vector<1xf32>
    %253 = vector.shape_cast %252 : vector<1xf32> to vector<1x1xf32>
    %254 = vector.broadcast %15 : vector<1x1xf32> to vector<1x32xf32>
    %255 = arith.addf %55, %254 : vector<1x32xf32>
    %256 = vector.extract_strided_slice %11 {offsets = [0, 0], sizes = [1, 32], strides = [1, 1]} : vector<1x128xf32> to vector<1x32xf32>
    %257 = vector.broadcast %253 : vector<1x1xf32> to vector<1x32xf32>
    %258 = arith.mulf %257, %256 : vector<1x32xf32>
    %259 = arith.addf %255, %258 : vector<1x32xf32>
    %c0_62 = arith.constant 0 : index
    %c0_63 = arith.constant 0 : index
    %260 = vector.load %arg3[%c0_62, %c0_63] : memref<1x32xf32, #tpu.memory_space<vmem>>, vector<1x32xf32>
    tpu.vector_store %arg3[%c0_62, %c0_63], %259 {strides = array<i32>} : memref<1x32xf32, #tpu.memory_space<vmem>>, vector<1x32xf32>,
    return
  }
}

</mosaic_0001>

<llo_original>
// kernel: decoder_forward.1
$region0: #{decoder_forward.1}
  #allocation0 [shape = 'u32[]', space=smem, size = 0x4, offset = 0x4, fixed_abs, tag = 'smem constant byte address 0x4 - core index']
  #allocation1 [shape = 'u32[144,128]{1,0:T(1,128)}', space=vmem, size = 0x12000, scoped, tag = 'internal scratch']
  %s0 = inlined_call_operand.vmem [shape: f32[13,256], index: 0, kind: input, shape index: {}]
  %s1 = inlined_call_operand.hbm [shape: f32[368,128], index: 1, kind: input, shape index: {}]
  %s2 = inlined_call_operand.hbm [shape: f32[4,256], index: 2, kind: output, shape index: {0}]
  %s3 = inlined_call_operand.vmem [shape: f32[1,32], index: 3, kind: output, shape index: {1}]
  %4 = xla_tuple %s2, %s3
  %s5 = sld [smem:[#allocation0]]
  $region30: #{decoder_forward.1} parent=0
    _
  %s7 = ssub.s32 1, %s5
  %s8 = scalar_select 0, %s7, %s5
  $region1: #{decoder_forward.1} parent=0
    #allocation2 [shape = 'u8[188416]{0}', space=vmem, size = 0x2e000, scoped, tag = 'input window, operand 1, single buffered']
    #allocation3 [shape = 's32[1]{0}', space=sflag, size = 0x4, scoped, tag = 'scoped memory for decoder_forward.1']
    #allocation4 [shape = 's32[1]{0}', space=sflag, size = 0x4, scoped, tag = 'scoped memory for decoder_forward.1']
    #allocation5 [shape = 'u8[4096]{0}', space=vmem, size = 0x1000, scoped, tag = 'output window, operand 0, single buffered']
    %9 = vsyncpa [#allocation3], 0
    %10 = vsyncpa [#allocation4], 0
    // Predicated region
    $region2: #{decoder_forward.1} parent=1 // pred_check
      _
    $region3: #{decoder_forward.1} parent=1 // pred_check_branch
      %12 = sbr.rel (0) target = $region5
    $region4: #{decoder_forward.1} parent=1 // pred_region
      _
    $region5: #{decoder_forward.1} parent=1 // pred_fallthru
      _
    // Predicated region
    $region6: #{decoder_forward.1} parent=1 // pred_check
      _
    $region7: #{decoder_forward.1} parent=1 // pred_check_branch
      %14 = sbr.rel (0) target = $region9
    $region8: #{decoder_forward.1} parent=1 // pred_region
      %s16 = ssub.s32 5888, 5888
      %17 = vsyncadd [#allocation3], %s16
      %s18 = sshll.u32 [#allocation2], 4
      %s19 = int_to_ptr.vmem [resolvable:$true] %s18
      %24 = dma.hbm_to_vmem [thread:$0]  %s1, 5888, %s19, [#allocation3], 128, 128, 8
    $region9: #{decoder_forward.1} parent=1 // pred_fallthru
      _
    // Predicated region
    $region10: #{decoder_forward.1} parent=1 // pred_check
      _
    $region11: #{decoder_forward.1} parent=1 // pred_check_branch
      %26 = sbr.rel (0) target = $region13
    $region12: #{decoder_forward.1} parent=1 // pred_region
      %27 = dma.done [#allocation3], 5888
    $region13: #{decoder_forward.1} parent=1 // pred_fallthru
      _
    %v28 = vld [vmem:[#allocation2] sm:$0xff]
    %v29 = vld [vmem:[#allocation2 + $0x8] sm:$0xff]
    %v30 = vld [vmem:[#allocation2 + $0x10] sm:$0xff]
    %v31 = vld [vmem:[#allocation2 + $0x18] sm:$0xff]
    %v32 = vld [vmem:[#allocation2 + $0x20] sm:$0xff]
    %v33 = vld [vmem:[#allocation2 + $0x28] sm:$0xff]
    %v34 = vld [vmem:[#allocation2 + $0x30] sm:$0xff]
    %v35 = vld [vmem:[#allocation2 + $0x38] sm:$0xff]
    %v36 = vld [vmem:[#allocation2 + $0x40] sm:$0xff]
    %v37 = vld [vmem:[#allocation2 + $0x48] sm:$0xff]
    %v38 = vld [vmem:[#allocation2 + $0x50] sm:$0xff]
    %v39 = vld [vmem:[#allocation2 + $0x58] sm:$0xff]
    %v40 = vld [vmem:[#allocation2 + $0x60] sm:$0xff]
    %v41 = vld [vmem:[#allocation2 + $0x68] sm:$0xff]
    %v42 = vld [vmem:[#allocation2 + $0x70] sm:$0xff]
    %v43 = vld [vmem:[#allocation2 + $0x78] sm:$0xff]
    %v44 = vld [vmem:[#allocation2 + $0x80] sm:$0xff]
    %v45 = vld [vmem:[#allocation2 + $0x88] sm:$0xff]
    %v46 = vld [vmem:[#allocation2 + $0x90] sm:$0xff]
    %v47 = vld [vmem:[#allocation2 + $0x98] sm:$0xff]
    %v48 = vld [vmem:[#allocation2 + $0xa0] sm:$0xff]
    %v49 = vld [vmem:[#allocation2 + $0xa8] sm:$0xff]
    %v50 = vld [vmem:[#allocation2 + $0xb0] sm:$0xff]
    %v51 = vld [vmem:[#allocation2 + $0xb8] sm:$0xff]
    %v52 = vld [vmem:[#allocation2 + $0xc0] sm:$0xff]
    %v53 = vld [vmem:[#allocation2 + $0xc8] sm:$0xff]
    %v54 = vld [vmem:[#allocation2 + $0xd0] sm:$0xff]
    %v55 = vld [vmem:[#allocation2 + $0xd8] sm:$0xff]
    %v56 = vld [vmem:[#allocation2 + $0xe0] sm:$0xff]
    %v57 = vld [vmem:[#allocation2 + $0xe8] sm:$0xff]
    %v58 = vld [vmem:[#allocation2 + $0xf0] sm:$0xff]
    %v59 = vld [vmem:[#allocation2 + $0xf8] sm:$0xff]
    %v60 = vld [vmem:[#allocation2 + $0x100] sm:$0xff]
    %v61 = vld [vmem:[#allocation2 + $0x108] sm:$0xff]
    %v62 = vld [vmem:[#allocation2 + $0x110] sm:$0xff]
    %v63 = vld [vmem:[#allocation2 + $0x118] sm:$0xff]
    %v64 = vld [vmem:[#allocation2 + $0x120] sm:$0xff]
    %v65 = vld [vmem:[#allocation2 + $0x128] sm:$0xff]
    %v66 = vld [vmem:[#allocation2 + $0x130] sm:$0xff]
    %v67 = vld [vmem:[#allocation2 + $0x138] sm:$0xff]
    %v68 = vld [vmem:[#allocation2 + $0x140] sm:$0xff]
    %v69 = vld [vmem:[#allocation2 + $0x148] sm:$0xff]
    %v70 = vld [vmem:[#allocation2 + $0x150] sm:$0xff]
    %v71 = vld [vmem:[#allocation2 + $0x158] sm:$0xff]
    %v72 = vld [vmem:[#allocation2 + $0x160] sm:$0xf]
    %v73 = vld [vmem:[#allocation2 + $0x164] sm:$0xf]
    %v74 = vld [vmem:[#allocation2 + $0x168] sm:$0x1]
    %v75 = vld [vmem:[#allocation2 + $0x169] sm:$0x1]
    %v76 = vld [vmem:[#allocation2 + $0x16a] sm:$0x1]
    %v77 = vld [vmem:[#allocation2 + $0x16b] sm:$0x1]
    %v78 = vld [vmem:[#allocation2 + $0x16c] sm:$0x1]
    %v79 = vld [vmem:[#allocation2 + $0x16d] sm:$0x1]
    %v80 = vld [vmem:[#allocation2 + $0x16e] sm:$0x1]
    %v81 = vld [vmem:[#allocation2 + $0x16f] sm:$0x1]
    %v82 = vld [vmem:[%s0] sm:$0xf]
    %s83 = scalar_lea.vmem %s0, 4
    %v84 = vld [vmem:[%s83] ss:$8 sm:$0x3]
    %v85 = vld [vmem:[%s0] sm:$0xe0]
    %v86 = vld [vmem:[%s0 + $0x10] sm:$0x1f]
    %v87 = vlaneseq
    %v88 = vshrl.u32 %v87, 7
    %v89 = vsub.s32 0, %v88
    %v90 = vrot.slane %v74, %v89
    %vm91 = vcmask 523264
    %v93 = vsel %vm91, %v82, 0
    %95 = vmatprep.subr.mxu0 0.0
    %96 = vmatpush1.msra.mxu0 %v60
    %97 = vmatprep.subr.mxu0 0.0
    %98 = vmatpush1.msra.mxu0 %v61
    %99 = vmatprep.subr.mxu0 0.0
    %100 = vmatpush1.msra.mxu0 %v62
    %101 = vmatprep.subr.mxu0 0.0
    %102 = vmatpush1.msra.mxu0 %v63
    %103 = vmatprep.subr.mxu0 0.0
    %104 = vmatpush1.msra.mxu0 %v64
    %105 = vmatprep.subr.mxu0 0.0
    %106 = vmatpush1.msra.mxu0 %v65
    %107 = vmatprep.subr.mxu0 0.0
    %108 = vmatpush1.msra.mxu0 %v66
    %109 = vmatprep.subr.mxu0 0.0
    %110 = vmatpush1.msra.mxu0 %v67
    %111 = vmatprep.subr.mxu0 0.0
    %112 = vmatpush1.msra.mxu0 0.0
    %113 = vmatprep.subr.mxu0 0.0
    %114 = vmatpush1.msra.mxu0 0.0
    %115 = vmatprep.subr.mxu0 0.0
    %116 = vmatpush1.msra.mxu0 0.0
    %117 = vmatprep.subr.mxu0 0.0
    %118 = vmatpush1.msra.mxu0 0.0
    %119 = vmatprep.subr.mxu0 0.0
    %120 = vmatpush1.msra.mxu0 0.0
    %121 = vmatprep.subr.mxu0 0.0
    %122 = vmatpush1.msra.mxu0 0.0
    %123 = vmatprep.subr.mxu0 0.0
    %124 = vmatpush1.msra.mxu0 0.0
    %125 = vmatprep.subr.mxu0 0.0
    %126 = vmatpush1.msra.mxu0 0.0
    %127 = vmatprep.subr.mxu0 0.0
    %128 = vmatpush1.msra.mxu0 0.0
    %129 = vmatprep.subr.mxu0 0.0
    %130 = vmatpush1.msra.mxu0 0.0
    %131 = vmatprep.subr.mxu0 0.0
    %132 = vmatpush1.msra.mxu0 0.0
    %133 = vmatprep.subr.mxu0 0.0
    %134 = vmatpush1.msra.mxu0 0.0
    %135 = vmatprep.subr.mxu0 0.0
    %136 = vmatpush1.msra.mxu0 0.0
    %137 = vmatprep.subr.mxu0 0.0
    %138 = vmatpush1.msra.mxu0 0.0
    %139 = vmatprep.subr.mxu0 0.0
    %140 = vmatpush1.msra.mxu0 0.0
    %141 = vmatprep.subr.mxu0 0.0
    %142 = vmatpush1.msra.mxu0 0.0
    %143 = vmatprep.subr.mxu0 0.0
    %144 = vmatpush1.msra.mxu0 0.0
    %145 = vmatprep.subr.mxu0 0.0
    %146 = vmatpush1.msra.mxu0 0.0
    %147 = vmatprep.subr.mxu0 0.0
    %148 = vmatpush1.msra.mxu0 0.0
    %149 = vmatprep.subr.mxu0 0.0
    %150 = vmatpush1.msra.mxu0 0.0
    %151 = vmatprep.subr.mxu0 0.0
    %152 = vmatpush1.msra.mxu0 0.0
    %153 = vmatprep.subr.mxu0 0.0
    %154 = vmatpush1.msra.mxu0 0.0
    %155 = vmatprep.subr.mxu0 0.0
    %156 = vmatpush1.msra.mxu0 0.0
    %157 = vmatprep.subr.mxu0 0.0
    %158 = vmatpush1.msra.mxu0 0.0
    %159 = vmatprep.mubr.f32.mxu0 0.0
    %160 = vmatmul.mubr.f32.gmra.mrb[0].mxu0 %v93
    %v161 = vpop.f32.mrb[0].mxu0
    %v162 = vadd.f32 %v90, %v161
    %v163 = vpop.f32.mrb[0].mxu0
    %164 = vdwg.mxu0
    %v165 = vtanh.pop %v162
    %v166 = vlaneseq
    %v167 = vshrl.u32 %v166, 7
    %v168 = vsub.s32 0, %v167
    %v169 = vrot.slane %v75, %v168
    %v170 = vmul.f32 %v165, %v169
    %vm171 = vcmask 1043456
    %v172 = vsel %vm171, %v170, 0.0
    %173 = vadd.xlane.f32.xlu0 %v172
    %v174 = vpop.xlane.xlu0 %173
    %v175 = vlaneseq
    %v176 = vshrl.u32 %v175, 7
    %v177 = vsub.s32 0, %v176
    %v178 = vrot.slane %v81, %v177
    %v179 = vadd.f32 %v174, %v178
    %vm180 = vcmask 3072
    %v181 = vsel %vm180, %v179, -inf
    %v182 = vrot.slane %v181, 4
    %v183 = vmax.f32 %v181, %v182
    %v184 = vrot.slane %v183, 2
    %v185 = vmax.f32 %v183, %v184
    %v186 = vrot.slane %v185, 1
    %v187 = vmax.f32 %v185, %v186
    %v188 = vsub.f32 %v179, %v187
    %v189 = vmul.f32 %v188, 1.442695
    %v190 = vpow.pop %v189
    %v191 = vsel %vm180, %v190, 0.0
    %v192 = vrot.slane %v191, 4
    %v193 = vadd.f32 %v191, %v192
    %v194 = vrot.slane %v193, 2
    %v195 = vadd.f32 %v193, %v194
    %v196 = vrot.slane %v195, 1
    %v197 = vadd.f32 %v195, %v196
    %v198 = vrcp.pop %v197
    %v199 = vmul.f32 %v190, %v198
    %201 = vset.pattern.permute.xlu0 0
    %202 = vperm.xlu0 %201, %v199
    %v203 = vpop.permute.xlu0 %202
    %v206 = vlaneseq
    %v207 = vshrl.u32 %v206, 7
    %v208 = vsub.s32 0, %v207
    %v209 = vrot.slane %v84, %v208
    %v210 = vlaneseq
    %v211 = vshrl.u32 %v210, 7
    %v212 = vsub.s32 1, %v211
    %v213 = vrot.slane %v84, %v212
    %v216 = vmul.f32 %v203, %v209
    %v217 = vmul.f32 %v203, %v213
    %v220 = vcombine.low %v216, %v217
    %222 = vst [vmem:[#allocation5] sm:$0xff] %v220
    %223 = vmatprep.subr.mxu0 0.0
    %224 = vmatpush1.msra.mxu0 %v28
    %225 = vmatprep.subr.mxu0 0.0
    %226 = vmatpush1.msra.mxu0 %v29
    %227 = vmatprep.subr.mxu0 0.0
    %228 = vmatpush1.msra.mxu0 %v30
    %229 = vmatprep.subr.mxu0 0.0
    %230 = vmatpush1.msra.mxu0 %v31
    %231 = vmatprep.subr.mxu0 0.0
    %232 = vmatpush1.msra.mxu0 %v32
    %233 = vmatprep.subr.mxu0 0.0
    %234 = vmatpush1.msra.mxu0 %v33
    %235 = vmatprep.subr.mxu0 0.0
    %236 = vmatpush1.msra.mxu0 %v34
    %237 = vmatprep.subr.mxu0 0.0
    %238 = vmatpush1.msra.mxu0 %v35
    %239 = vmatprep.subr.mxu0 0.0
    %240 = vmatpush1.msra.mxu0 %v36
    %241 = vmatprep.subr.mxu0 0.0
    %242 = vmatpush1.msra.mxu0 %v37
    %243 = vmatprep.subr.mxu0 0.0
    %244 = vmatpush1.msra.mxu0 %v38
    %245 = vmatprep.subr.mxu0 0.0
    %246 = vmatpush1.msra.mxu0 %v39
    %247 = vmatprep.subr.mxu0 0.0
    %248 = vmatpush1.msra.mxu0 %v40
    %249 = vmatprep.subr.mxu0 0.0
    %250 = vmatpush1.msra.mxu0 %v41
    %251 = vmatprep.subr.mxu0 0.0
    %252 = vmatpush1.msra.mxu0 %v42
    %253 = vmatprep.subr.mxu0 0.0
    %254 = vmatpush1.msra.mxu0 %v43
    %255 = vmatprep.subr.mxu0 0.0
    %256 = vmatpush1.msra.mxu0 %v44
    %257 = vmatprep.subr.mxu0 0.0
    %258 = vmatpush1.msra.mxu0 %v45
    %259 = vmatprep.subr.mxu0 0.0
    %260 = vmatpush1.msra.mxu0 %v46
    %261 = vmatprep.subr.mxu0 0.0
    %262 = vmatpush1.msra.mxu0 %v47
    %263 = vmatprep.subr.mxu0 0.0
    %264 = vmatpush1.msra.mxu0 %v48
    %265 = vmatprep.subr.mxu0 0.0
    %266 = vmatpush1.msra.mxu0 %v49
    %267 = vmatprep.subr.mxu0 0.0
    %268 = vmatpush1.msra.mxu0 %v50
    %269 = vmatprep.subr.mxu0 0.0
    %270 = vmatpush1.msra.mxu0 %v51
    %271 = vmatprep.subr.mxu0 0.0
    %272 = vmatpush1.msra.mxu0 %v52
    %273 = vmatprep.subr.mxu0 0.0
    %274 = vmatpush1.msra.mxu0 %v53
    %275 = vmatprep.subr.mxu0 0.0
    %276 = vmatpush1.msra.mxu0 %v54
    %277 = vmatprep.subr.mxu0 0.0
    %278 = vmatpush1.msra.mxu0 %v55
    %279 = vmatprep.subr.mxu0 0.0
    %280 = vmatpush1.msra.mxu0 %v56
    %281 = vmatprep.subr.mxu0 0.0
    %282 = vmatpush1.msra.mxu0 %v57
    %283 = vmatprep.subr.mxu0 0.0
    %284 = vmatpush1.msra.mxu0 %v58
    %285 = vmatprep.subr.mxu0 0.0
    %286 = vmatpush1.msra.mxu0 %v59
    %287 = vmatprep.mubr.f32.mxu0 %v217
    %288 = vmatmul.mubr.f32.gmra.mrb[0].mxu0 %v216
    %v289 = vpop.f32.mrb[0].mxu0
    %v290 = vadd.f32 0.0, %v289
    %v291 = vpop.f32.mrb[0].mxu0
    %292 = vdwg.mxu0
    %v294 = vrot.slane %v290, 1
    %295 = vrot.lane.b32.xlu0 %v294, 96
    %v296 = vpop.permute.xlu0 %295
    %v298 = vadd.f32 %v290, %v296
    %v299 = vrot.slane %v290, 2
    %300 = vrot.lane.b32.xlu0 %v299, 64
    %v301 = vpop.permute.xlu0 %300
    %v303 = vadd.f32 %v298, %v301
    %v304 = vrot.slane %v290, 3
    %305 = vrot.lane.b32.xlu0 %v304, 32
    %v306 = vpop.permute.xlu0 %305
    %v308 = vadd.f32 %v303, %v306
    %v309 = vmul.f32 %v216, %v72
    %v310 = vsel %vm171, %v309, 0.0
    %311 = vadd.xlane.f32.xlu0 %v310
    %v312 = vpop.xlane.xlu0 %311
    %v313 = vmul.f32 %v217, %v73
    %v314 = vsel %vm171, %v313, 0.0
    %315 = vadd.xlane.f32.xlu0 %v314
    %v316 = vpop.xlane.xlu0 %315
    %v317 = vadd.f32 %v312, %v316
    %v318 = vsel %vm171, %v317, 0.0
    %v319 = vrot.slane %v318, 4
    %v320 = vadd.f32 %v318, %v319
    %v321 = vrot.slane %v320, 2
    %v322 = vadd.f32 %v320, %v321
    %v323 = vrot.slane %v322, 1
    %v324 = vadd.f32 %v322, %v323
    %v325 = vlaneseq
    %v326 = vshrl.u32 %v325, 7
    %v327 = vsub.s32 0, %v326
    %v328 = vrot.slane %v78, %v327
    %v329 = vmul.f32 %v85, %v328
    %v330 = vmul.f32 %v86, %v328
    %vm331 = vcmask 1047557
    %v332 = vsel %vm331, %v329, 0.0
    %333 = vadd.xlane.f32.xlu0 %v332
    %v334 = vpop.xlane.xlu0 %333
    %vm335 = vcmask 1044480
    %v336 = vsel %vm335, %v330, 0.0
    %337 = vadd.xlane.f32.xlu0 %v336
    %v338 = vpop.xlane.xlu0 %337
    %v339 = vadd.f32 %v334, %v324
    %v340 = vadd.f32 %v338, %v324
    %v341 = vadd.f32 %v339, %v178
    %v342 = vadd.f32 %v340, %v178
    %344 = vset.pattern.permute.xlu0 1
    %345 = vperm.xlu0 %344, %v341
    %v346 = vpop.permute.xlu0 %345
    %349 = vset.pattern.permute.xlu0 1
    %350 = vperm.xlu0 %349, %v342
    %v351 = vpop.permute.xlu0 %350
    %v353 = vlaneseq
    %v354 = vshrl.u32 %v353, 7
    %v355 = vsub.s32 0, %v354
    %v356 = vrot.slane %v76, %v355
    %v357 = vmul.f32 %v346, %v356
    %v358 = vmul.f32 %v351, %v356
    %v359 = vlaneseq
    %v360 = vshrl.u32 %v359, 7
    %v361 = vsub.s32 0, %v360
    %v362 = vrot.slane %v77, %v361
    %v363 = vadd.f32 %v357, %v362
    %v364 = vadd.f32 %v358, %v362
    %vm365 = vcmask 261120
    %v367 = vsel %vm365, 0.0, 0
    %369 = vmatprep.subr.mxu0 0.0
    %370 = vmatpush1.msra.mxu0 %v68
    %371 = vmatprep.subr.mxu0 0.0
    %372 = vmatpush1.msra.mxu0 %v69
    %373 = vmatprep.subr.mxu0 0.0
    %374 = vmatpush1.msra.mxu0 %v70
    %375 = vmatprep.subr.mxu0 0.0
    %376 = vmatpush1.msra.mxu0 %v71
    %377 = vmatprep.subr.mxu0 0.0
    %378 = vmatpush1.msra.mxu0 0.0
    %379 = vmatprep.subr.mxu0 0.0
    %380 = vmatpush1.msra.mxu0 0.0
    %381 = vmatprep.subr.mxu0 0.0
    %382 = vmatpush1.msra.mxu0 0.0
    %383 = vmatprep.subr.mxu0 0.0
    %384 = vmatpush1.msra.mxu0 0.0
    %385 = vmatprep.subr.mxu0 0.0
    %386 = vmatpush1.msra.mxu0 0.0
    %387 = vmatprep.subr.mxu0 0.0
    %388 = vmatpush1.msra.mxu0 0.0
    %389 = vmatprep.subr.mxu0 0.0
    %390 = vmatpush1.msra.mxu0 0.0
    %391 = vmatprep.subr.mxu0 0.0
    %392 = vmatpush1.msra.mxu0 0.0
    %393 = vmatprep.subr.mxu0 0.0
    %394 = vmatpush1.msra.mxu0 0.0
    %395 = vmatprep.subr.mxu0 0.0
    %396 = vmatpush1.msra.mxu0 0.0
    %397 = vmatprep.subr.mxu0 0.0
    %398 = vmatpush1.msra.mxu0 0.0
    %399 = vmatprep.subr.mxu0 0.0
    %400 = vmatpush1.msra.mxu0 0.0
    %401 = vmatprep.subr.mxu0 0.0
    %402 = vmatpush1.msra.mxu0 0.0
    %403 = vmatprep.subr.mxu0 0.0
    %404 = vmatpush1.msra.mxu0 0.0
    %405 = vmatprep.subr.mxu0 0.0
    %406 = vmatpush1.msra.mxu0 0.0
    %407 = vmatprep.subr.mxu0 0.0
    %408 = vmatpush1.msra.mxu0 0.0
    %409 = vmatprep.subr.mxu0 0.0
    %410 = vmatpush1.msra.mxu0 0.0
    %411 = vmatprep.subr.mxu0 0.0
    %412 = vmatpush1.msra.mxu0 0.0
    %413 = vmatprep.subr.mxu0 0.0
    %414 = vmatpush1.msra.mxu0 0.0
    %415 = vmatprep.subr.mxu0 0.0
    %416 = vmatpush1.msra.mxu0 0.0
    %417 = vmatprep.subr.mxu0 0.0
    %418 = vmatpush1.msra.mxu0 0.0
    %419 = vmatprep.subr.mxu0 0.0
    %420 = vmatpush1.msra.mxu0 0.0
    %421 = vmatprep.subr.mxu0 0.0
    %422 = vmatpush1.msra.mxu0 0.0
    %423 = vmatprep.subr.mxu0 0.0
    %424 = vmatpush1.msra.mxu0 0.0
    %425 = vmatprep.subr.mxu0 0.0
    %426 = vmatpush1.msra.mxu0 0.0
    %427 = vmatprep.subr.mxu0 0.0
    %428 = vmatpush1.msra.mxu0 0.0
    %429 = vmatprep.subr.mxu0 0.0
    %430 = vmatpush1.msra.mxu0 0.0
    %431 = vmatprep.subr.mxu0 0.0
    %432 = vmatpush1.msra.mxu0 0.0
    %433 = vmatprep.mubr.f32.mxu0 0.0
    %434 = vmatmul.mubr.f32.gmra.mrb[0].mxu0 %v367
    %v435 = vpop.f32.mrb[0].mxu0
    %v436 = vadd.f32 0.0, %v435
    %v437 = vpop.f32.mrb[0].mxu0
    %438 = vdwg.mxu0
    %v440 = vrot.slane %v436, 3
    %v442 = vadd.f32 %v363, %v440
    %v443 = vxor.u32 %v442, 2147483648
    %v444 = vmul.f32 %v443, 1.442695
    %v445 = vpow.pop %v444
    %v446 = vadd.f32 %v445, 1.0
    %v447 = vrcp.pop %v446
    %v448 = vmul.f32 1.0, %v447
    %v449 = vmul.f32 %v448, 2.0
    %v450 = vsub.f32 %v449, 1.0
    %v451 = vmul.f32 %v448, 0.0
    %453 = vrot.lane.b32.xlu0 %v450, 64
    %v454 = vpop.permute.xlu0 %453
    %v456 = vmul.f32 %v448, %v454
    %458 = vrot.lane.b32.xlu0 %v456, 32
    %v459 = vpop.permute.xlu0 %458
    %v461 = vadd.f32 %v451, %v459
    %v462 = vtanh.pop %v461
    %464 = vrot.lane.b32.xlu0 %v462, 64
    %v465 = vpop.permute.xlu0 %464
    %v467 = vmul.f32 %v448, %v465
    %v469 = vrot.slane %v467, 5
    %470 = vrot.lane.b32.xlu0 %v469, 32
    %v471 = vpop.permute.xlu0 %470
    %v472 = vsel %vm365, %v471, 0
    %474 = vmatprep.subr.mxu0 0.0
    %475 = vmatpush1.msra.mxu0 %v68
    %476 = vmatprep.subr.mxu0 0.0
    %477 = vmatpush1.msra.mxu0 %v69
    %478 = vmatprep.subr.mxu0 0.0
    %479 = vmatpush1.msra.mxu0 %v70
    %480 = vmatprep.subr.mxu0 0.0
    %481 = vmatpush1.msra.mxu0 %v71
    %482 = vmatprep.subr.mxu0 0.0
    %483 = vmatpush1.msra.mxu0 0.0
    %484 = vmatprep.subr.mxu0 0.0
    %485 = vmatpush1.msra.mxu0 0.0
    %486 = vmatprep.subr.mxu0 0.0
    %487 = vmatpush1.msra.mxu0 0.0
    %488 = vmatprep.subr.mxu0 0.0
    %489 = vmatpush1.msra.mxu0 0.0
    %490 = vmatprep.subr.mxu0 0.0
    %491 = vmatpush1.msra.mxu0 0.0
    %492 = vmatprep.subr.mxu0 0.0
    %493 = vmatpush1.msra.mxu0 0.0
    %494 = vmatprep.subr.mxu0 0.0
    %495 = vmatpush1.msra.mxu0 0.0
    %496 = vmatprep.subr.mxu0 0.0
    %497 = vmatpush1.msra.mxu0 0.0
    %498 = vmatprep.subr.mxu0 0.0
    %499 = vmatpush1.msra.mxu0 0.0
    %500 = vmatprep.subr.mxu0 0.0
    %501 = vmatpush1.msra.mxu0 0.0
    %502 = vmatprep.subr.mxu0 0.0
    %503 = vmatpush1.msra.mxu0 0.0
    %504 = vmatprep.subr.mxu0 0.0
    %505 = vmatpush1.msra.mxu0 0.0
    %506 = vmatprep.subr.mxu0 0.0
    %507 = vmatpush1.msra.mxu0 0.0
    %508 = vmatprep.subr.mxu0 0.0
    %509 = vmatpush1.msra.mxu0 0.0
    %510 = vmatprep.subr.mxu0 0.0
    %511 = vmatpush1.msra.mxu0 0.0
    %512 = vmatprep.subr.mxu0 0.0
    %513 = vmatpush1.msra.mxu0 0.0
    %514 = vmatprep.subr.mxu0 0.0
    %515 = vmatpush1.msra.mxu0 0.0
    %516 = vmatprep.subr.mxu0 0.0
    %517 = vmatpush1.msra.mxu0 0.0
    %518 = vmatprep.subr.mxu0 0.0
    %519 = vmatpush1.msra.mxu0 0.0
    %520 = vmatprep.subr.mxu0 0.0
    %521 = vmatpush1.msra.mxu0 0.0
    %522 = vmatprep.subr.mxu0 0.0
    %523 = vmatpush1.msra.mxu0 0.0
    %524 = vmatprep.subr.mxu0 0.0
    %525 = vmatpush1.msra.mxu0 0.0
    %526 = vmatprep.subr.mxu0 0.0
    %527 = vmatpush1.msra.mxu0 0.0
    %528 = vmatprep.subr.mxu0 0.0
    %529 = vmatpush1.msra.mxu0 0.0
    %530 = vmatprep.subr.mxu0 0.0
    %531 = vmatpush1.msra.mxu0 0.0
    %532 = vmatprep.subr.mxu0 0.0
    %533 = vmatpush1.msra.mxu0 0.0
    %534 = vmatprep.subr.mxu0 0.0
    %535 = vmatpush1.msra.mxu0 0.0
    %536 = vmatprep.subr.mxu0 0.0
    %537 = vmatpush1.msra.mxu0 0.0
    %538 = vmatprep.mubr.f32.mxu0 0.0
    %539 = vmatmul.mubr.f32.gmra.mrb[0].mxu0 %v472
    %v540 = vpop.f32.mrb[0].mxu0
    %v541 = vadd.f32 0.0, %v540
    %v542 = vpop.f32.mrb[0].mxu0
    %543 = vdwg.mxu0
    %v545 = vrot.slane %v541, 2
    %v547 = vadd.f32 %v363, %v545
    %v548 = vxor.u32 %v547, 2147483648
    %v549 = vmul.f32 %v548, 1.442695
    %v550 = vpow.pop %v549
    %v551 = vadd.f32 %v550, 1.0
    %v552 = vrcp.pop %v551
    %v553 = vmul.f32 1.0, %v552
    %v554 = vmul.f32 %v553, 2.0
    %v555 = vsub.f32 %v554, 1.0
    %v557 = vrot.slane %v461, 7
    %v559 = vmul.f32 %v553, %v557
    %561 = vrot.lane.b32.xlu0 %v555, 64
    %v562 = vpop.permute.xlu0 %561
    %v564 = vmul.f32 %v553, %v562
    %566 = vrot.lane.b32.xlu0 %v564, 32
    %v567 = vpop.permute.xlu0 %566
    %v569 = vadd.f32 %v559, %v567
    %v570 = vtanh.pop %v569
    %572 = vrot.lane.b32.xlu0 %v570, 64
    %v573 = vpop.permute.xlu0 %572
    %v575 = vmul.f32 %v553, %v573
    %v577 = vrot.slane %v575, 6
    %578 = vrot.lane.b32.xlu0 %v577, 32
    %v579 = vpop.permute.xlu0 %578
    %v580 = vsel %vm365, %v579, 0
    %582 = vmatprep.subr.mxu0 0.0
    %583 = vmatpush1.msra.mxu0 %v68
    %584 = vmatprep.subr.mxu0 0.0
    %585 = vmatpush1.msra.mxu0 %v69
    %586 = vmatprep.subr.mxu0 0.0
    %587 = vmatpush1.msra.mxu0 %v70
    %588 = vmatprep.subr.mxu0 0.0
    %589 = vmatpush1.msra.mxu0 %v71
    %590 = vmatprep.subr.mxu0 0.0
    %591 = vmatpush1.msra.mxu0 0.0
    %592 = vmatprep.subr.mxu0 0.0
    %593 = vmatpush1.msra.mxu0 0.0
    %594 = vmatprep.subr.mxu0 0.0
    %595 = vmatpush1.msra.mxu0 0.0
    %596 = vmatprep.subr.mxu0 0.0
    %597 = vmatpush1.msra.mxu0 0.0
    %598 = vmatprep.subr.mxu0 0.0
    %599 = vmatpush1.msra.mxu0 0.0
    %600 = vmatprep.subr.mxu0 0.0
    %601 = vmatpush1.msra.mxu0 0.0
    %602 = vmatprep.subr.mxu0 0.0
    %603 = vmatpush1.msra.mxu0 0.0
    %604 = vmatprep.subr.mxu0 0.0
    %605 = vmatpush1.msra.mxu0 0.0
    %606 = vmatprep.subr.mxu0 0.0
    %607 = vmatpush1.msra.mxu0 0.0
    %608 = vmatprep.subr.mxu0 0.0
    %609 = vmatpush1.msra.mxu0 0.0
    %610 = vmatprep.subr.mxu0 0.0
    %611 = vmatpush1.msra.mxu0 0.0
    %612 = vmatprep.subr.mxu0 0.0
    %613 = vmatpush1.msra.mxu0 0.0
    %614 = vmatprep.subr.mxu0 0.0
    %615 = vmatpush1.msra.mxu0 0.0
    %616 = vmatprep.subr.mxu0 0.0
    %617 = vmatpush1.msra.mxu0 0.0
    %618 = vmatprep.subr.mxu0 0.0
    %619 = vmatpush1.msra.mxu0 0.0
    %620 = vmatprep.subr.mxu0 0.0
    %621 = vmatpush1.msra.mxu0 0.0
    %622 = vmatprep.subr.mxu0 0.0
    %623 = vmatpush1.msra.mxu0 0.0
    %624 = vmatprep.subr.mxu0 0.0
    %625 = vmatpush1.msra.mxu0 0.0
    %626 = vmatprep.subr.mxu0 0.0
    %627 = vmatpush1.msra.mxu0 0.0
    %628 = vmatprep.subr.mxu0 0.0
    %629 = vmatpush1.msra.mxu0 0.0
    %630 = vmatprep.subr.mxu0 0.0
    %631 = vmatpush1.msra.mxu0 0.0
    %632 = vmatprep.subr.mxu0 0.0
    %633 = vmatpush1.msra.mxu0 0.0
    %634 = vmatprep.subr.mxu0 0.0
    %635 = vmatpush1.msra.mxu0 0.0
    %636 = vmatprep.subr.mxu0 0.0
    %637 = vmatpush1.msra.mxu0 0.0
    %638 = vmatprep.subr.mxu0 0.0
    %639 = vmatpush1.msra.mxu0 0.0
    %640 = vmatprep.subr.mxu0 0.0
    %641 = vmatpush1.msra.mxu0 0.0
    %642 = vmatprep.subr.mxu0 0.0
    %643 = vmatpush1.msra.mxu0 0.0
    %644 = vmatprep.subr.mxu0 0.0
    %645 = vmatpush1.msra.mxu0 0.0
    %646 = vmatprep.mubr.f32.mxu0 0.0
    %647 = vmatmul.mubr.f32.gmra.mrb[0].mxu0 %v580
    %v648 = vpop.f32.mrb[0].mxu0
    %v649 = vadd.f32 0.0, %v648
    %v650 = vpop.f32.mrb[0].mxu0
    %651 = vdwg.mxu0
    %v653 = vrot.slane %v649, 1
    %v655 = vadd.f32 %v363, %v653
    %v656 = vxor.u32 %v655, 2147483648
    %v657 = vmul.f32 %v656, 1.442695
    %v658 = vpow.pop %v657
    %v659 = vadd.f32 %v658, 1.0
    %v660 = vrcp.pop %v659
    %v661 = vmul.f32 1.0, %v660
    %v662 = vmul.f32 %v661, 2.0
    %v663 = vsub.f32 %v662, 1.0
    %v665 = vrot.slane %v569, 7
    %v667 = vmul.f32 %v661, %v665
    %669 = vrot.lane.b32.xlu0 %v663, 64
    %v670 = vpop.permute.xlu0 %669
    %v672 = vmul.f32 %v661, %v670
    %674 = vrot.lane.b32.xlu0 %v672, 32
    %v675 = vpop.permute.xlu0 %674
    %v677 = vadd.f32 %v667, %v675
    %v678 = vtanh.pop %v677
    %680 = vrot.lane.b32.xlu0 %v678, 64
    %v681 = vpop.permute.xlu0 %680
    %v683 = vmul.f32 %v661, %v681
    %v685 = vrot.slane %v683, 7
    %686 = vrot.lane.b32.xlu0 %v685, 32
    %v687 = vpop.permute.xlu0 %686
    %v688 = vsel %vm365, %v687, 0
    %690 = vmatprep.subr.mxu0 0.0
    %691 = vmatpush1.msra.mxu0 %v68
    %692 = vmatprep.subr.mxu0 0.0
    %693 = vmatpush1.msra.mxu0 %v69
    %694 = vmatprep.subr.mxu0 0.0
    %695 = vmatpush1.msra.mxu0 %v70
    %696 = vmatprep.subr.mxu0 0.0
    %697 = vmatpush1.msra.mxu0 %v71
    %698 = vmatprep.subr.mxu0 0.0
    %699 = vmatpush1.msra.mxu0 0.0
    %700 = vmatprep.subr.mxu0 0.0
    %701 = vmatpush1.msra.mxu0 0.0
    %702 = vmatprep.subr.mxu0 0.0
    %703 = vmatpush1.msra.mxu0 0.0
    %704 = vmatprep.subr.mxu0 0.0
    %705 = vmatpush1.msra.mxu0 0.0
    %706 = vmatprep.subr.mxu0 0.0
    %707 = vmatpush1.msra.mxu0 0.0
    %708 = vmatprep.subr.mxu0 0.0
    %709 = vmatpush1.msra.mxu0 0.0
    %710 = vmatprep.subr.mxu0 0.0
    %711 = vmatpush1.msra.mxu0 0.0
    %712 = vmatprep.subr.mxu0 0.0
    %713 = vmatpush1.msra.mxu0 0.0
    %714 = vmatprep.subr.mxu0 0.0
    %715 = vmatpush1.msra.mxu0 0.0
    %716 = vmatprep.subr.mxu0 0.0
    %717 = vmatpush1.msra.mxu0 0.0
    %718 = vmatprep.subr.mxu0 0.0
    %719 = vmatpush1.msra.mxu0 0.0
    %720 = vmatprep.subr.mxu0 0.0
    %721 = vmatpush1.msra.mxu0 0.0
    %722 = vmatprep.subr.mxu0 0.0
    %723 = vmatpush1.msra.mxu0 0.0
    %724 = vmatprep.subr.mxu0 0.0
    %725 = vmatpush1.msra.mxu0 0.0
    %726 = vmatprep.subr.mxu0 0.0
    %727 = vmatpush1.msra.mxu0 0.0
    %728 = vmatprep.subr.mxu0 0.0
    %729 = vmatpush1.msra.mxu0 0.0
    %730 = vmatprep.subr.mxu0 0.0
    %731 = vmatpush1.msra.mxu0 0.0
    %732 = vmatprep.subr.mxu0 0.0
    %733 = vmatpush1.msra.mxu0 0.0
    %734 = vmatprep.subr.mxu0 0.0
    %735 = vmatpush1.msra.mxu0 0.0
    %736 = vmatprep.subr.mxu0 0.0
    %737 = vmatpush1.msra.mxu0 0.0
    %738 = vmatprep.subr.mxu0 0.0
    %739 = vmatpush1.msra.mxu0 0.0
    %740 = vmatprep.subr.mxu0 0.0
    %741 = vmatpush1.msra.mxu0 0.0
    %742 = vmatprep.subr.mxu0 0.0
    %743 = vmatpush1.msra.mxu0 0.0
    %744 = vmatprep.subr.mxu0 0.0
    %745 = vmatpush1.msra.mxu0 0.0
    %746 = vmatprep.subr.mxu0 0.0
    %747 = vmatpush1.msra.mxu0 0.0
    %748 = vmatprep.subr.mxu0 0.0
    %749 = vmatpush1.msra.mxu0 0.0
    %750 = vmatprep.subr.mxu0 0.0
    %751 = vmatpush1.msra.mxu0 0.0
    %752 = vmatprep.subr.mxu0 0.0
    %753 = vmatpush1.msra.mxu0 0.0
    %754 = vmatprep.mubr.f32.mxu0 0.0
    %755 = vmatmul.mubr.f32.gmra.mrb[0].mxu0 %v688
    %v756 = vpop.f32.mrb[0].mxu0
    %v757 = vadd.f32 0.0, %v756
    %v758 = vpop.f32.mrb[0].mxu0
    %759 = vdwg.mxu0
    %v760 = vadd.f32 %v364, %v757
    %v761 = vxor.u32 %v760, 2147483648
    %v762 = vmul.f32 %v761, 1.442695
    %v763 = vpow.pop %v762
    %v764 = vadd.f32 %v763, 1.0
    %v765 = vrcp.pop %v764
    %v766 = vmul.f32 1.0, %v765
    %v767 = vmul.f32 %v766, 2.0
    %v768 = vsub.f32 %v767, 1.0
    %v770 = vrot.slane %v677, 7
    %v772 = vmul.f32 %v766, %v770
    %774 = vrot.lane.b32.xlu0 %v768, 64
    %v775 = vpop.permute.xlu0 %774
    %v777 = vmul.f32 %v766, %v775
    %779 = vrot.lane.b32.xlu0 %v777, 32
    %v780 = vpop.permute.xlu0 %779
    %v782 = vadd.f32 %v772, %v780
    %v783 = vtanh.pop %v782
    %785 = vrot.lane.b32.xlu0 %v783, 64
    %v786 = vpop.permute.xlu0 %785
    %v788 = vmul.f32 %v766, %v786
    %790 = vrot.lane.b32.xlu0 %v788, 32
    %v791 = vpop.permute.xlu0 %790
    %v792 = vsel %vm365, %v791, 0
    %794 = vmatprep.subr.mxu0 0.0
    %795 = vmatpush1.msra.mxu0 %v68
    %796 = vmatprep.subr.mxu0 0.0
    %797 = vmatpush1.msra.mxu0 %v69
    %798 = vmatprep.subr.mxu0 0.0
    %799 = vmatpush1.msra.mxu0 %v70
    %800 = vmatprep.subr.mxu0 0.0
    %801 = vmatpush1.msra.mxu0 %v71
    %802 = vmatprep.subr.mxu0 0.0
    %803 = vmatpush1.msra.mxu0 0.0
    %804 = vmatprep.subr.mxu0 0.0
    %805 = vmatpush1.msra.mxu0 0.0
    %806 = vmatprep.subr.mxu0 0.0
    %807 = vmatpush1.msra.mxu0 0.0
    %808 = vmatprep.subr.mxu0 0.0
    %809 = vmatpush1.msra.mxu0 0.0
    %810 = vmatprep.subr.mxu0 0.0
    %811 = vmatpush1.msra.mxu0 0.0
    %812 = vmatprep.subr.mxu0 0.0
    %813 = vmatpush1.msra.mxu0 0.0
    %814 = vmatprep.subr.mxu0 0.0
    %815 = vmatpush1.msra.mxu0 0.0
    %816 = vmatprep.subr.mxu0 0.0
    %817 = vmatpush1.msra.mxu0 0.0
    %818 = vmatprep.subr.mxu0 0.0
    %819 = vmatpush1.msra.mxu0 0.0
    %820 = vmatprep.subr.mxu0 0.0
    %821 = vmatpush1.msra.mxu0 0.0
    %822 = vmatprep.subr.mxu0 0.0
    %823 = vmatpush1.msra.mxu0 0.0
    %824 = vmatprep.subr.mxu0 0.0
    %825 = vmatpush1.msra.mxu0 0.0
    %826 = vmatprep.subr.mxu0 0.0
    %827 = vmatpush1.msra.mxu0 0.0
    %828 = vmatprep.subr.mxu0 0.0
    %829 = vmatpush1.msra.mxu0 0.0
    %830 = vmatprep.subr.mxu0 0.0
    %831 = vmatpush1.msra.mxu0 0.0
    %832 = vmatprep.subr.mxu0 0.0
    %833 = vmatpush1.msra.mxu0 0.0
    %834 = vmatprep.subr.mxu0 0.0
    %835 = vmatpush1.msra.mxu0 0.0
    %836 = vmatprep.subr.mxu0 0.0
    %837 = vmatpush1.msra.mxu0 0.0
    %838 = vmatprep.subr.mxu0 0.0
    %839 = vmatpush1.msra.mxu0 0.0
    %840 = vmatprep.subr.mxu0 0.0
    %841 = vmatpush1.msra.mxu0 0.0
    %842 = vmatprep.subr.mxu0 0.0
    %843 = vmatpush1.msra.mxu0 0.0
    %844 = vmatprep.subr.mxu0 0.0
    %845 = vmatpush1.msra.mxu0 0.0
    %846 = vmatprep.subr.mxu0 0.0
    %847 = vmatpush1.msra.mxu0 0.0
    %848 = vmatprep.subr.mxu0 0.0
    %849 = vmatpush1.msra.mxu0 0.0
    %850 = vmatprep.subr.mxu0 0.0
    %851 = vmatpush1.msra.mxu0 0.0
    %852 = vmatprep.subr.mxu0 0.0
    %853 = vmatpush1.msra.mxu0 0.0
    %854 = vmatprep.subr.mxu0 0.0
    %855 = vmatpush1.msra.mxu0 0.0
    %856 = vmatprep.subr.mxu0 0.0
    %857 = vmatpush1.msra.mxu0 0.0
    %858 = vmatprep.mubr.f32.mxu0 0.0
    %859 = vmatmul.mubr.f32.gmra.mrb[0].mxu0 %v792
    %v860 = vpop.f32.mrb[0].mxu0
    %v861 = vadd.f32 0.0, %v860
    %v862 = vpop.f32.mrb[0].mxu0
    %863 = vdwg.mxu0
    %v865 = vrot.slane %v861, 7
    %v867 = vadd.f32 %v364, %v865
    %v868 = vxor.u32 %v867, 2147483648
    %v869 = vmul.f32 %v868, 1.442695
    %v870 = vpow.pop %v869
    %v871 = vadd.f32 %v870, 1.0
    %v872 = vrcp.pop %v871
    %v873 = vmul.f32 1.0, %v872
    %v874 = vmul.f32 %v873, 2.0
    %v875 = vsub.f32 %v874, 1.0
    %v877 = vrot.slane %v782, 7
    %v879 = vmul.f32 %v873, %v877
    %881 = vrot.lane.b32.xlu0 %v875, 64
    %v882 = vpop.permute.xlu0 %881
    %v884 = vmul.f32 %v873, %v882
    %886 = vrot.lane.b32.xlu0 %v884, 32
    %v887 = vpop.permute.xlu0 %886
    %v889 = vadd.f32 %v879, %v887
    %v890 = vtanh.pop %v889
    %892 = vrot.lane.b32.xlu0 %v890, 64
    %v893 = vpop.permute.xlu0 %892
    %v895 = vmul.f32 %v873, %v893
    %v897 = vrot.slane %v895, 1
    %898 = vrot.lane.b32.xlu0 %v897, 32
    %v899 = vpop.permute.xlu0 %898
    %v900 = vsel %vm365, %v899, 0
    %902 = vmatprep.subr.mxu0 0.0
    %903 = vmatpush1.msra.mxu0 %v68
    %904 = vmatprep.subr.mxu0 0.0
    %905 = vmatpush1.msra.mxu0 %v69
    %906 = vmatprep.subr.mxu0 0.0
    %907 = vmatpush1.msra.mxu0 %v70
    %908 = vmatprep.subr.mxu0 0.0
    %909 = vmatpush1.msra.mxu0 %v71
    %910 = vmatprep.subr.mxu0 0.0
    %911 = vmatpush1.msra.mxu0 0.0
    %912 = vmatprep.subr.mxu0 0.0
    %913 = vmatpush1.msra.mxu0 0.0
    %914 = vmatprep.subr.mxu0 0.0
    %915 = vmatpush1.msra.mxu0 0.0
    %916 = vmatprep.subr.mxu0 0.0
    %917 = vmatpush1.msra.mxu0 0.0
    %918 = vmatprep.subr.mxu0 0.0
    %919 = vmatpush1.msra.mxu0 0.0
    %920 = vmatprep.subr.mxu0 0.0
    %921 = vmatpush1.msra.mxu0 0.0
    %922 = vmatprep.subr.mxu0 0.0
    %923 = vmatpush1.msra.mxu0 0.0
    %924 = vmatprep.subr.mxu0 0.0
    %925 = vmatpush1.msra.mxu0 0.0
    %926 = vmatprep.subr.mxu0 0.0
    %927 = vmatpush1.msra.mxu0 0.0
    %928 = vmatprep.subr.mxu0 0.0
    %929 = vmatpush1.msra.mxu0 0.0
    %930 = vmatprep.subr.mxu0 0.0
    %931 = vmatpush1.msra.mxu0 0.0
    %932 = vmatprep.subr.mxu0 0.0
    %933 = vmatpush1.msra.mxu0 0.0
    %934 = vmatprep.subr.mxu0 0.0
    %935 = vmatpush1.msra.mxu0 0.0
    %936 = vmatprep.subr.mxu0 0.0
    %937 = vmatpush1.msra.mxu0 0.0
    %938 = vmatprep.subr.mxu0 0.0
    %939 = vmatpush1.msra.mxu0 0.0
    %940 = vmatprep.subr.mxu0 0.0
    %941 = vmatpush1.msra.mxu0 0.0
    %942 = vmatprep.subr.mxu0 0.0
    %943 = vmatpush1.msra.mxu0 0.0
    %944 = vmatprep.subr.mxu0 0.0
    %945 = vmatpush1.msra.mxu0 0.0
    %946 = vmatprep.subr.mxu0 0.0
    %947 = vmatpush1.msra.mxu0 0.0
    %948 = vmatprep.subr.mxu0 0.0
    %949 = vmatpush1.msra.mxu0 0.0
    %950 = vmatprep.subr.mxu0 0.0
    %951 = vmatpush1.msra.mxu0 0.0
    %952 = vmatprep.subr.mxu0 0.0
    %953 = vmatpush1.msra.mxu0 0.0
    %954 = vmatprep.subr.mxu0 0.0
    %955 = vmatpush1.msra.mxu0 0.0
    %956 = vmatprep.subr.mxu0 0.0
    %957 = vmatpush1.msra.mxu0 0.0
    %958 = vmatprep.subr.mxu0 0.0
    %959 = vmatpush1.msra.mxu0 0.0
    %960 = vmatprep.subr.mxu0 0.0
    %961 = vmatpush1.msra.mxu0 0.0
    %962 = vmatprep.subr.mxu0 0.0
    %963 = vmatpush1.msra.mxu0 0.0
    %964 = vmatprep.subr.mxu0 0.0
    %965 = vmatpush1.msra.mxu0 0.0
    %966 = vmatprep.mubr.f32.mxu0 0.0
    %967 = vmatmul.mubr.f32.gmra.mrb[0].mxu0 %v900
    %v968 = vpop.f32.mrb[0].mxu0
    %v969 = vadd.f32 0.0, %v968
    %v970 = vpop.f32.mrb[0].mxu0
    %971 = vdwg.mxu0
    %v973 = vrot.slane %v969, 6
    %v975 = vadd.f32 %v364, %v973
    %v976 = vxor.u32 %v975, 2147483648
    %v977 = vmul.f32 %v976, 1.442695
    %v978 = vpow.pop %v977
    %v979 = vadd.f32 %v978, 1.0
    %v980 = vrcp.pop %v979
    %v981 = vmul.f32 1.0, %v980
    %v982 = vmul.f32 %v981, 2.0
    %v983 = vsub.f32 %v982, 1.0
    %v985 = vrot.slane %v889, 7
    %v987 = vmul.f32 %v981, %v985
    %989 = vrot.lane.b32.xlu0 %v983, 64
    %v990 = vpop.permute.xlu0 %989
    %v992 = vmul.f32 %v981, %v990
    %994 = vrot.lane.b32.xlu0 %v992, 32
    %v995 = vpop.permute.xlu0 %994
    %v997 = vadd.f32 %v987, %v995
    %v998 = vtanh.pop %v997
    %1000 = vrot.lane.b32.xlu0 %v998, 64
    %v1001 = vpop.permute.xlu0 %1000
    %v1003 = vmul.f32 %v981, %v1001
    %v1005 = vrot.slane %v1003, 2
    %1006 = vrot.lane.b32.xlu0 %v1005, 32
    %v1007 = vpop.permute.xlu0 %1006
    %v1008 = vsel %vm365, %v1007, 0
    %1010 = vmatprep.subr.mxu0 0.0
    %1011 = vmatpush1.msra.mxu0 %v68
    %1012 = vmatprep.subr.mxu0 0.0
    %1013 = vmatpush1.msra.mxu0 %v69
    %1014 = vmatprep.subr.mxu0 0.0
    %1015 = vmatpush1.msra.mxu0 %v70
    %1016 = vmatprep.subr.mxu0 0.0
    %1017 = vmatpush1.msra.mxu0 %v71
    %1018 = vmatprep.subr.mxu0 0.0
    %1019 = vmatpush1.msra.mxu0 0.0
    %1020 = vmatprep.subr.mxu0 0.0
    %1021 = vmatpush1.msra.mxu0 0.0
    %1022 = vmatprep.subr.mxu0 0.0
    %1023 = vmatpush1.msra.mxu0 0.0
    %1024 = vmatprep.subr.mxu0 0.0
    %1025 = vmatpush1.msra.mxu0 0.0
    %1026 = vmatprep.subr.mxu0 0.0
    %1027 = vmatpush1.msra.mxu0 0.0
    %1028 = vmatprep.subr.mxu0 0.0
    %1029 = vmatpush1.msra.mxu0 0.0
    %1030 = vmatprep.subr.mxu0 0.0
    %1031 = vmatpush1.msra.mxu0 0.0
    %1032 = vmatprep.subr.mxu0 0.0
    %1033 = vmatpush1.msra.mxu0 0.0
    %1034 = vmatprep.subr.mxu0 0.0
    %1035 = vmatpush1.msra.mxu0 0.0
    %1036 = vmatprep.subr.mxu0 0.0
    %1037 = vmatpush1.msra.mxu0 0.0
    %1038 = vmatprep.subr.mxu0 0.0
    %1039 = vmatpush1.msra.mxu0 0.0
    %1040 = vmatprep.subr.mxu0 0.0
    %1041 = vmatpush1.msra.mxu0 0.0
    %1042 = vmatprep.subr.mxu0 0.0
    %1043 = vmatpush1.msra.mxu0 0.0
    %1044 = vmatprep.subr.mxu0 0.0
    %1045 = vmatpush1.msra.mxu0 0.0
    %1046 = vmatprep.subr.mxu0 0.0
    %1047 = vmatpush1.msra.mxu0 0.0
    %1048 = vmatprep.subr.mxu0 0.0
    %1049 = vmatpush1.msra.mxu0 0.0
    %1050 = vmatprep.subr.mxu0 0.0
    %1051 = vmatpush1.msra.mxu0 0.0
    %1052 = vmatprep.subr.mxu0 0.0
    %1053 = vmatpush1.msra.mxu0 0.0
    %1054 = vmatprep.subr.mxu0 0.0
    %1055 = vmatpush1.msra.mxu0 0.0
    %1056 = vmatprep.subr.mxu0 0.0
    %1057 = vmatpush1.msra.mxu0 0.0
    %1058 = vmatprep.subr.mxu0 0.0
    %1059 = vmatpush1.msra.mxu0 0.0
    %1060 = vmatprep.subr.mxu0 0.0
    %1061 = vmatpush1.msra.mxu0 0.0
    %1062 = vmatprep.subr.mxu0 0.0
    %1063 = vmatpush1.msra.mxu0 0.0
    %1064 = vmatprep.subr.mxu0 0.0
    %1065 = vmatpush1.msra.mxu0 0.0
    %1066 = vmatprep.subr.mxu0 0.0
    %1067 = vmatpush1.msra.mxu0 0.0
    %1068 = vmatprep.subr.mxu0 0.0
    %1069 = vmatpush1.msra.mxu0 0.0
    %1070 = vmatprep.subr.mxu0 0.0
    %1071 = vmatpush1.msra.mxu0 0.0
    %1072 = vmatprep.subr.mxu0 0.0
    %1073 = vmatpush1.msra.mxu0 0.0
    %1074 = vmatprep.mubr.f32.mxu0 0.0
    %1075 = vmatmul.mubr.f32.gmra.mrb[0].mxu0 %v1008
    %v1076 = vpop.f32.mrb[0].mxu0
    %v1077 = vadd.f32 0.0, %v1076
    %v1078 = vpop.f32.mrb[0].mxu0
    %1079 = vdwg.mxu0
    %v1081 = vrot.slane %v1077, 5
    %v1083 = vadd.f32 %v364, %v1081
    %v1084 = vxor.u32 %v1083, 2147483648
    %v1085 = vmul.f32 %v1084, 1.442695
    %v1086 = vpow.pop %v1085
    %v1087 = vadd.f32 %v1086, 1.0
    %v1088 = vrcp.pop %v1087
    %v1089 = vmul.f32 1.0, %v1088
    %v1090 = vmul.f32 %v1089, 2.0
    %v1091 = vsub.f32 %v1090, 1.0
    %v1093 = vrot.slane %v997, 7
    %v1095 = vmul.f32 %v1089, %v1093
    %1097 = vrot.lane.b32.xlu0 %v1091, 64
    %v1098 = vpop.permute.xlu0 %1097
    %v1100 = vmul.f32 %v1089, %v1098
    %1102 = vrot.lane.b32.xlu0 %v1100, 32
    %v1103 = vpop.permute.xlu0 %1102
    %v1105 = vadd.f32 %v1095, %v1103
    %v1106 = vtanh.pop %v1105
    %1108 = vrot.lane.b32.xlu0 %v1106, 64
    %v1109 = vpop.permute.xlu0 %1108
    %v1111 = vmul.f32 %v1089, %v1109
    %v1113 = vrot.slane %v1111, 3
    %1114 = vrot.lane.b32.xlu0 %v1113, 32
    %v1115 = vpop.permute.xlu0 %1114
    %v1116 = vsel %vm365, %v1115, 0
    %1118 = vmatprep.subr.mxu0 0.0
    %1119 = vmatpush1.msra.mxu0 %v68
    %1120 = vmatprep.subr.mxu0 0.0
    %1121 = vmatpush1.msra.mxu0 %v69
    %1122 = vmatprep.subr.mxu0 0.0
    %1123 = vmatpush1.msra.mxu0 %v70
    %1124 = vmatprep.subr.mxu0 0.0
    %1125 = vmatpush1.msra.mxu0 %v71
    %1126 = vmatprep.subr.mxu0 0.0
    %1127 = vmatpush1.msra.mxu0 0.0
    %1128 = vmatprep.subr.mxu0 0.0
    %1129 = vmatpush1.msra.mxu0 0.0
    %1130 = vmatprep.subr.mxu0 0.0
    %1131 = vmatpush1.msra.mxu0 0.0
    %1132 = vmatprep.subr.mxu0 0.0
    %1133 = vmatpush1.msra.mxu0 0.0
    %1134 = vmatprep.subr.mxu0 0.0
    %1135 = vmatpush1.msra.mxu0 0.0
    %1136 = vmatprep.subr.mxu0 0.0
    %1137 = vmatpush1.msra.mxu0 0.0
    %1138 = vmatprep.subr.mxu0 0.0
    %1139 = vmatpush1.msra.mxu0 0.0
    %1140 = vmatprep.subr.mxu0 0.0
    %1141 = vmatpush1.msra.mxu0 0.0
    %1142 = vmatprep.subr.mxu0 0.0
    %1143 = vmatpush1.msra.mxu0 0.0
    %1144 = vmatprep.subr.mxu0 0.0
    %1145 = vmatpush1.msra.mxu0 0.0
    %1146 = vmatprep.subr.mxu0 0.0
    %1147 = vmatpush1.msra.mxu0 0.0
    %1148 = vmatprep.subr.mxu0 0.0
    %1149 = vmatpush1.msra.mxu0 0.0
    %1150 = vmatprep.subr.mxu0 0.0
    %1151 = vmatpush1.msra.mxu0 0.0
    %1152 = vmatprep.subr.mxu0 0.0
    %1153 = vmatpush1.msra.mxu0 0.0
    %1154 = vmatprep.subr.mxu0 0.0
    %1155 = vmatpush1.msra.mxu0 0.0
    %1156 = vmatprep.subr.mxu0 0.0
    %1157 = vmatpush1.msra.mxu0 0.0
    %1158 = vmatprep.subr.mxu0 0.0
    %1159 = vmatpush1.msra.mxu0 0.0
    %1160 = vmatprep.subr.mxu0 0.0
    %1161 = vmatpush1.msra.mxu0 0.0
    %1162 = vmatprep.subr.mxu0 0.0
    %1163 = vmatpush1.msra.mxu0 0.0
    %1164 = vmatprep.subr.mxu0 0.0
    %1165 = vmatpush1.msra.mxu0 0.0
    %1166 = vmatprep.subr.mxu0 0.0
    %1167 = vmatpush1.msra.mxu0 0.0
    %1168 = vmatprep.subr.mxu0 0.0
    %1169 = vmatpush1.msra.mxu0 0.0
    %1170 = vmatprep.subr.mxu0 0.0
    %1171 = vmatpush1.msra.mxu0 0.0
    %1172 = vmatprep.subr.mxu0 0.0
    %1173 = vmatpush1.msra.mxu0 0.0
    %1174 = vmatprep.subr.mxu0 0.0
    %1175 = vmatpush1.msra.mxu0 0.0
    %1176 = vmatprep.subr.mxu0 0.0
    %1177 = vmatpush1.msra.mxu0 0.0
    %1178 = vmatprep.subr.mxu0 0.0
    %1179 = vmatpush1.msra.mxu0 0.0
    %1180 = vmatprep.subr.mxu0 0.0
    %1181 = vmatpush1.msra.mxu0 0.0
    %1182 = vmatprep.mubr.f32.mxu0 0.0
    %1183 = vmatmul.mubr.f32.gmra.mrb[0].mxu0 %v1116
    %v1184 = vpop.f32.mrb[0].mxu0
    %v1185 = vadd.f32 0.0, %v1184
    %v1186 = vpop.f32.mrb[0].mxu0
    %1187 = vdwg.mxu0
    %v1189 = vrot.slane %v1185, 4
    %v1191 = vadd.f32 %v364, %v1189
    %v1192 = vxor.u32 %v1191, 2147483648
    %v1193 = vmul.f32 %v1192, 1.442695
    %v1194 = vpow.pop %v1193
    %v1195 = vadd.f32 %v1194, 1.0
    %v1196 = vrcp.pop %v1195
    %v1197 = vmul.f32 1.0, %v1196
    %v1198 = vmul.f32 %v1197, 2.0
    %v1199 = vsub.f32 %v1198, 1.0
    %v1201 = vrot.slane %v1105, 7
    %v1203 = vmul.f32 %v1197, %v1201
    %1205 = vrot.lane.b32.xlu0 %v1199, 64
    %v1206 = vpop.permute.xlu0 %1205
    %v1208 = vmul.f32 %v1197, %v1206
    %1210 = vrot.lane.b32.xlu0 %v1208, 32
    %v1211 = vpop.permute.xlu0 %1210
    %v1213 = vadd.f32 %v1203, %v1211
    %v1214 = vtanh.pop %v1213
    %1216 = vrot.lane.b32.xlu0 %v1214, 64
    %v1217 = vpop.permute.xlu0 %1216
    %v1219 = vmul.f32 %v1197, %v1217
    %v1221 = vrot.slane %v79, 4
    %1222 = vrot.lane.b32.xlu0 %v1221, 96
    %v1223 = vpop.permute.xlu0 %1222
    %v1225 = vmul.f32 %v1219, %v1223
    %1227 = vrot.lane.b32.xlu0 %v1225, 32
    %v1228 = vpop.permute.xlu0 %1227
    %vm1230 = vcmask 258052
    %v1231 = vsel %vm1230, %v1228, 0.0
    %1232 = vadd.xlane.f32.xlu0 %v1231
    %v1233 = vpop.xlane.xlu0 %1232
    %1235 = vset.pattern.permute.xlu0 2
    %1236 = vperm.xlu0 %1235, %v81
    %v1237 = vpop.permute.xlu0 %1236
    %v1239 = vadd.f32 %v308, %v1237
    %v1241 = vrot.slane %v80, 4
    %v1243 = vmul.f32 %v1233, %v1241
    %v1245 = vrot.slane %v1243, 4
    %v1247 = vadd.f32 %v1239, %v1245
    %vm1248 = vcmask 253952
    %1249 = vst.msk [vmem:[%s3] sm:$0x1] %vm1248, %v1247
    // Predicated region
    $region14: #{decoder_forward.1} parent=1 // pred_check
      _
    $region15: #{decoder_forward.1} parent=1 // pred_check_branch
      %1251 = sbr.rel (0) target = $region17
    $region16: #{decoder_forward.1} parent=1 // pred_region
      %s1253 = ssub.s32 128, 128
      %1254 = vsyncadd [#allocation4], %s1253
      %s1256 = sshll.u32 [#allocation5], 4
      %s1257 = int_to_ptr.vmem [resolvable:$true] %s1256
      %1259 = dma.vmem_to_hbm [thread:$0]  %s1257, 128, %s2, [#allocation4]
    $region17: #{decoder_forward.1} parent=1 // pred_fallthru
      _
    // Predicated region
    $region18: #{decoder_forward.1} parent=1 // pred_check
      _
    $region19: #{decoder_forward.1} parent=1 // pred_check_branch
      %1261 = sbr.rel (0) target = $region21
    $region20: #{decoder_forward.1} parent=1 // pred_region
      _
    $region21: #{decoder_forward.1} parent=1 // pred_fallthru
      _
    // Predicated region
    $region22: #{decoder_forward.1} parent=1 // pred_check
      _
    $region23: #{decoder_forward.1} parent=1 // pred_check_branch
      %1263 = sbr.rel (0) target = $region25
    $region24: #{decoder_forward.1} parent=1 // pred_region
      %1264 = dma.done [#allocation4], 128
    $region25: #{decoder_forward.1} parent=1 // pred_fallthru
      _
    // Predicated region
    $region26: #{decoder_forward.1} parent=1 // pred_check
      _
    $region27: #{decoder_forward.1} parent=1 // pred_check_branch
      %1266 = sbr.rel (0) target = $region29
    $region28: #{decoder_forward.1} parent=1 // pred_region
      _
    $region29: #{decoder_forward.1} parent=1 // pred_fallthru
      _
    %1267 = vsyncpa [#allocation3], 1
    %1268 = vsyncpa [#allocation4], 1

</llo_original>
